<compile_context>
chip_gen: v5e
topology: v5e:2x2
jax: 0.10.0
libtpu: 0.0.40
codegen_flags: <defaults>
</compile_context>

<pallas_src>
import functools

import jax
import jax.numpy as jnp
import numpy as np
from jax.experimental import pallas as pl
from jax.experimental.pallas import tpu as pltpu


def _attn_pool_kernel(q_ref, k_ref, len_ref,
                      wq_ref, wkp_ref, b1_ref,
                      w2_ref, b2_ref, w3_ref, b3_ref,
                      o_ref, *, mxu_dtype):
    BBLK, T, E = k_ref.shape
    H1 = wq_ref.shape[-1]

    q = q_ref[...].astype(jnp.float32)                 # (BBLK, E)
    keys = k_ref[...].astype(jnp.float32)              # (BBLK, T, E)

    def mx(x):                                         # MXU operand dtype (f32 or bf16)
        return x if x.dtype == mxu_dtype else x.astype(mxu_dtype)

    # ---- layer 1 (concat folded into the weights, single K=2E key-side dot) ----
    # NOTE: reshapes below are layout-preserving only because T is a multiple of 8
    # (wrapper pads T otherwise), so they cost no VMEM relayout.
    keys2d = keys.reshape(BBLK * T, E)
    qk2d = (q[:, None, :] * keys).reshape(BBLK * T, E)
    kin2d = jnp.concatenate([keys2d, qk2d], axis=-1)   # (BBLK*T, 2E)

    h_q = jnp.dot(mx(q), wq_ref[...],
                  preferred_element_type=jnp.float32) + b1_ref[...]      # (BBLK, H1)
    h_k = jnp.dot(mx(kin2d), wkp_ref[...],
                  preferred_element_type=jnp.float32)                    # (BBLK*T, H1)

    z1 = jax.nn.sigmoid(h_k.reshape(BBLK, T, H1) + h_q[:, None, :])      # (BBLK, T, H1)
    z1 = z1.reshape(BBLK * T, H1)

    # ---- layer 2 (MXU) ----
    z2 = jax.nn.sigmoid(jnp.dot(mx(z1), w2_ref[...],
                                preferred_element_type=jnp.float32)
                        + b2_ref[...])                                   # (BBLK*T, H2)

    # ---- layer 3: N=1 projection off the MXU -> VPU multiply + XLU lane-sum ----
    score = jnp.sum(z2 * w3_ref[...], axis=-1, keepdims=True) + b3_ref[...]  # (BBLK*T, 1)
    score = score.reshape(BBLK, T, 1)

    # ---- mask (weight_normalization=False -> zero padding) & pool --------------
    t_idx = jax.lax.broadcasted_iota(jnp.int32, (1, T, 1), 1)
    mask = t_idx < len_ref[...][:, :, None]                              # (BBLK, T, 1)
    wts = jnp.where(mask, score, jnp.zeros_like(score))

    # Sum over T lives on sublanes -> XLU reduce, off the VPU/MXU critical path.
    o_ref[...] = jnp.sum(wts * keys, axis=1).astype(o_ref.dtype)         # (BBLK, E)


def attention_sequence_pooling(query, keys, keys_length, params, *,
                               bblk=None, mxu_dtype=jnp.float32,
                               vmem_limit_bytes=48 * 1024 * 1024):
    """query: (B,1,E); keys: (B,T,E); keys_length: (B,) int  ->  (B,1,E).

    vmem_limit_bytes: 48 MiB is safe on v7x (64 MiB physical); may be raised to
    64-96 MiB on v5e/v6e (128 MiB physical) if bblk is pushed higher.
    """
    B, T, E = keys.shape
    w1, b1, w2, b2, w3, b3 = params
    H1, H2 = w2.shape

    # Pad T to a sublane multiple so in-kernel (BBLK,T,*)<->(BBLK*T,*) reshapes are
    # free (padded slots have t >= keys_length, so they are masked out).
    if T % 8 != 0:
        T_pad = ((T + 7) // 8) * 8
        keys = jnp.pad(keys, ((0, 0), (0, T_pad - T), (0, 0)))
        T = T_pad

    # Fold the [q, k, q-k, q*k] lane-concat into layer-1 weight row blocks:
    #   att_in @ W1 = q @ (Wq + Wd) + [k, q*k] @ [[Wk - Wd], [Wp]]
    wq = (w1[0 * E:1 * E] + w1[2 * E:3 * E]).astype(mxu_dtype)           # (E, H1)
    wkp = jnp.concatenate([w1[1 * E:2 * E] - w1[2 * E:3 * E],
                           w1[3 * E:4 * E]], axis=0).astype(mxu_dtype)   # (2E, H1)
    w2c = w2.astype(mxu_dtype)                                           # (H1, H2)
    w3row = w3.reshape(1, H2).astype(jnp.float32)                        # VPU weight row
    b1f = b1.reshape(1, H1).astype(jnp.float32)
    b2f = b2.reshape(1, H2).astype(jnp.float32)
    b3f = b3.reshape(1, 1).astype(jnp.float32)

    # ---- batch block size from a VMEM budget (not a hard cap) ------------------
    if bblk is None:
        # rough f32 live bytes per batch row inside one grid step
        per_row_bytes = 4 * T * (3 * E + 3 * H1 + 2 * H2 + 4)
        budget = 24 * 1024 * 1024
        cap = max(8, min(2048, (budget // per_row_bytes) // 8 * 8))
        if B <= cap:
            bblk = B
            # v7x has 2 TensorCores; give the "parallel" batch axis >= 2 blocks
            # when the halves are still large enough to amortize per-step overhead.
            if B % 16 == 0 and B // 2 >= 256:
                bblk = B // 2
        else:
            bblk = cap          # multiple of 8 -> valid sublane tiling for (bblk, E)

    grid = (pl.cdiv(B, bblk),)  # ragged tail block handled by Pallas edge masking

    q2 = query.reshape(B, E)                                   # native dtype
    lens = keys_length.astype(jnp.int32).reshape(B, 1)

    out = pl.pallas_call(
        functools.partial(_attn_pool_kernel, mxu_dtype=mxu_dtype),
        out_shape=jax.ShapeDtypeStruct((B, E), query.dtype),
        grid_spec=pltpu.PrefetchScalarGridSpec(
            num_scalar_prefetch=0,
            grid=grid,
            in_specs=[
                pl.BlockSpec((bblk, E), lambda i: (i, 0)),         # query rows
                pl.BlockSpec((bblk, T, E), lambda i: (i, 0, 0)),   # keys rows (native dtype)
                pl.BlockSpec((bblk, 1), lambda i: (i, 0)),         # keys_length
                # weights/biases: constant index_map -> resident across the grid.
                pl.BlockSpec(wq.shape, lambda i: (0, 0)),
                pl.BlockSpec(wkp.shape, lambda i: (0, 0)),
                pl.BlockSpec(b1f.shape, lambda i: (0, 0)),
                pl.BlockSpec(w2c.shape, lambda i: (0, 0)),
                pl.BlockSpec(b2f.shape, lambda i: (0, 0)),
                pl.BlockSpec(w3row.shape, lambda i: (0, 0)),
                pl.BlockSpec(b3f.shape, lambda i: (0, 0)),
            ],
            out_specs=pl.BlockSpec((bblk, E), lambda i: (i, 0)),
        ),
        compiler_params=pltpu.CompilerParams(
            dimension_semantics=("parallel",),        # independent batch blocks
            vmem_limit_bytes=vmem_limit_bytes),
    )(q2, keys, lens, wq, wkp, b1f, w2c, b2f, w3row, b3f)

    return out.reshape(B, 1, E)


def init_params(key, embedding_dim=4, hidden_units=(80, 40)):
    """Deterministic synthetic init of LocalActivationUnit weights."""
    dims = (4 * embedding_dim,) + tuple(hidden_units) + (1,)
    ks = jax.random.split(key, len(dims) - 1)
    params = []
    for k, (din, dout) in zip(ks, zip(dims[:-1], dims[1:])):
        w = jax.random.normal(k, (din, dout), jnp.float32) * 0.1
        b = jnp.zeros((1, dout), jnp.float32)
        params += [w, b]
    return params


def reference(query, keys, keys_length, params):
    """Pure-JAX reference mirroring the PyTorch forward (default flags)."""
    w1, b1, w2, b2, w3, b3 = params
    B, T, E = keys.shape
    q = jnp.broadcast_to(query, keys.shape)
    x = jnp.concatenate([q, keys, q - keys, q * keys], axis=-1)
    z1 = jax.nn.sigmoid(x @ w1 + b1)
    z2 = jax.nn.sigmoid(z1 @ w2 + b2)
    score = z2 @ w3 + b3                                   # (B,T,1)
    outputs = jnp.transpose(score, (0, 2, 1))              # (B,1,T)
    mask = (jnp.arange(T)[None, :] < keys_length[:, None])[:, None, :]
    outputs = jnp.where(mask, outputs, jnp.zeros_like(outputs))
    return outputs @ keys                                  # (B,1,E)


if __name__ == "__main__":
    B, T, E = 16, 8, 4          # batch, max seq length, embedding_dim
    key = jax.random.PRNGKey(0)
    kq, kk, kl, kp = jax.random.split(key, 4)

    query = jax.random.normal(kq, (B, 1, E), jnp.float32)
    keys = jax.random.normal(kk, (B, T, E), jnp.float32)
    keys_length = jax.random.randint(kl, (B,), 1, T + 1).astype(jnp.int32)
    params = init_params(kp, embedding_dim=E, hidden_units=(80, 40))

    ref = reference(query, keys, keys_length, params)

    # f32 MXU-operand path (v5e-friendly default). Tolerance allows for TPU default
    # matmul precision / weight-fold reassociation differences vs the XLA reference.
    out = attention_sequence_pooling(query, keys, keys_length, params)
    out = jax.block_until_ready(out)
    np.testing.assert_allclose(np.asarray(out), np.asarray(ref),
                               rtol=2e-2, atol=2e-2)

    # bf16 MXU-operand path (v6e/v7x); accumulation + sigmoid/mask/pool stay f32.
    out_bf16 = attention_sequence_pooling(query, keys, keys_length, params,
                                          mxu_dtype=jnp.bfloat16)
    out_bf16 = jax.block_until_ready(out_bf16)
    np.testing.assert_allclose(np.asarray(out_bf16), np.asarray(ref),
                               rtol=5e-2, atol=5e-2)

    print("KERNEL_OK")
</pallas_src>

<mosaic_0001>
module attributes {stable_mosaic.version = 11 : i64} {
  func.func @_attn_pool_kernel(%arg0: i32, %arg1: memref<16x4xf32, #tpu.memory_space<vmem>>, %arg2: memref<16x8x4xf32, #tpu.memory_space<vmem>>, %arg3: memref<16x1xi32, #tpu.memory_space<vmem>>, %arg4: memref<4x80xf32, #tpu.memory_space<vmem>>, %arg5: memref<8x80xf32, #tpu.memory_space<vmem>>, %arg6: memref<1x80xf32, #tpu.memory_space<vmem>>, %arg7: memref<80x40xf32, #tpu.memory_space<vmem>>, %arg8: memref<1x40xf32, #tpu.memory_space<vmem>>, %arg9: memref<1x40xf32, #tpu.memory_space<vmem>>, %arg10: memref<1x1xf32, #tpu.memory_space<vmem>>, %arg11: memref<16x4xf32, #tpu.memory_space<vmem>>) attributes {dimension_semantics = [#tpu.dimension_semantics<parallel>], iteration_bounds = array<i64: 1>, scalar_prefetch = 0 : i64, scratch_operands = 0 : i64, tpu.core_type = #tpu.core_type<tc>, window_params = [{transform_indices = @transform_0, window_bounds = array<i64: 16, 4>}, {transform_indices = @transform_1, window_bounds = array<i64: 16, 8, 4>}, {transform_indices = @transform_2, window_bounds = array<i64: 16, 1>}, {pipeline_mode = #tpu.pipeline_mode<synchronous>, transform_indices = @transform_3, window_bounds = array<i64: 4, 80>}, {pipeline_mode = #tpu.pipeline_mode<synchronous>, transform_indices = @transform_4, window_bounds = array<i64: 8, 80>}, {pipeline_mode = #tpu.pipeline_mode<synchronous>, transform_indices = @transform_5, window_bounds = array<i64: 1, 80>}, {pipeline_mode = #tpu.pipeline_mode<synchronous>, transform_indices = @transform_6, window_bounds = array<i64: 80, 40>}, {pipeline_mode = #tpu.pipeline_mode<synchronous>, transform_indices = @transform_7, window_bounds = array<i64: 1, 40>}, {pipeline_mode = #tpu.pipeline_mode<synchronous>, transform_indices = @transform_8, window_bounds = array<i64: 1, 40>}, {pipeline_mode = #tpu.pipeline_mode<synchronous>, transform_indices = @transform_9, window_bounds = array<i64: 1, 1>}, {transform_indices = @transform_10, window_bounds = array<i64: 16, 4>}]} {
    %c0 = arith.constant 0 : index
    %c0_0 = arith.constant 0 : index
    %0 = vector.load %arg1[%c0, %c0_0] : memref<16x4xf32, #tpu.memory_space<vmem>>, vector<16x4xf32>
    %c0_1 = arith.constant 0 : index
    %c0_2 = arith.constant 0 : index
    %c0_3 = arith.constant 0 : index
    %1 = vector.load %arg2[%c0_1, %c0_2, %c0_3] : memref<16x8x4xf32, #tpu.memory_space<vmem>>, vector<16x8x4xf32>
    %2 = vector.shape_cast %1 : vector<16x8x4xf32> to vector<128x4xf32>
    %3 = vector.shape_cast %0 : vector<16x4xf32> to vector<16x1x4xf32>
    %4 = vector.broadcast %3 : vector<16x1x4xf32> to vector<16x8x4xf32>
    %5 = arith.mulf %4, %1 : vector<16x8x4xf32>
    %6 = vector.shape_cast %5 : vector<16x8x4xf32> to vector<128x4xf32>
    %7 = tpu.concatenate %2, %6 in 1 : vector<128x4xf32>, vector<128x4xf32> -> vector<128x8xf32>
    %c0_4 = arith.constant 0 : index
    %c0_5 = arith.constant 0 : index
    %8 = vector.load %arg4[%c0_4, %c0_5] : memref<4x80xf32, #tpu.memory_space<vmem>>, vector<4x80xf32>
    %cst = arith.constant dense<0.000000e+00> : vector<16x80xf32>
    %9 = tpu.matmul %0, %8, %cst {dimension_numbers = #tpu.dot_dimension_numbers<[1], [0], [0], [1], [0, 0, 1, 1], [], []>} : vector<16x4xf32>, vector<4x80xf32>, vector<16x80xf32> -> vector<16x80xf32>
    %c0_6 = arith.constant 0 : index
    %c0_7 = arith.constant 0 : index
    %10 = vector.load %arg6[%c0_6, %c0_7] : memref<1x80xf32, #tpu.memory_space<vmem>>, vector<1x80xf32>
    %11 = vector.broadcast %10 : vector<1x80xf32> to vector<16x80xf32>
    %12 = arith.addf %9, %11 : vector<16x80xf32>
    %c0_8 = arith.constant 0 : index
    %c0_9 = arith.constant 0 : index
    %13 = vector.load %arg5[%c0_8, %c0_9] : memref<8x80xf32, #tpu.memory_space<vmem>>, vector<8x80xf32>
    %cst_10 = arith.constant dense<0.000000e+00> : vector<128x80xf32>
    %14 = tpu.matmul %7, %13, %cst_10 {dimension_numbers = #tpu.dot_dimension_numbers<[1], [0], [0], [1], [0, 0, 1, 1], [], []>} : vector<128x8xf32>, vector<8x80xf32>, vector<128x80xf32> -> vector<128x80xf32>
    %15 = vector.shape_cast %14 : vector<128x80xf32> to vector<16x8x80xf32>
    %16 = vector.shape_cast %12 : vector<16x80xf32> to vector<16x1x80xf32>
    %17 = vector.broadcast %16 : vector<16x1x80xf32> to vector<16x8x80xf32>
    %18 = arith.addf %15, %17 : vector<16x8x80xf32>
    %19 = arith.negf %18 : vector<16x8x80xf32>
    %20 = math.exp %19 : vector<16x8x80xf32>
    %cst_11 = arith.constant 1.000000e+00 : f32
    %21 = vector.broadcast %cst_11 : f32 to vector<16x8x80xf32>
    %22 = arith.addf %21, %20 : vector<16x8x80xf32>
    %23 = arith.divf %21, %22 : vector<16x8x80xf32>
    %24 = vector.shape_cast %23 : vector<16x8x80xf32> to vector<128x80xf32>
    %c0_12 = arith.constant 0 : index
    %c0_13 = arith.constant 0 : index
    %25 = vector.load %arg7[%c0_12, %c0_13] : memref<80x40xf32, #tpu.memory_space<vmem>>, vector<80x40xf32>
    %cst_14 = arith.constant dense<0.000000e+00> : vector<128x40xf32>
    %26 = tpu.matmul %24, %25, %cst_14 {dimension_numbers = #tpu.dot_dimension_numbers<[1], [0], [0], [1], [0, 0, 1, 1], [], []>} : vector<128x80xf32>, vector<80x40xf32>, vector<128x40xf32> -> vector<128x40xf32>
    %c0_15 = arith.constant 0 : index
    %c0_16 = arith.constant 0 : index
    %27 = vector.load %arg8[%c0_15, %c0_16] : memref<1x40xf32, #tpu.memory_space<vmem>>, vector<1x40xf32>
    %28 = vector.broadcast %27 : vector<1x40xf32> to vector<128x40xf32>
    %29 = arith.addf %26, %28 : vector<128x40xf32>
    %30 = arith.negf %29 : vector<128x40xf32>
    %31 = math.exp %30 : vector<128x40xf32>
    %cst_17 = arith.constant 1.000000e+00 : f32
    %32 = vector.broadcast %cst_17 : f32 to vector<128x40xf32>
    %33 = arith.addf %32, %31 : vector<128x40xf32>
    %34 = arith.divf %32, %33 : vector<128x40xf32>
    %c0_18 = arith.constant 0 : index
    %c0_19 = arith.constant 0 : index
    %35 = vector.load %arg9[%c0_18, %c0_19] : memref<1x40xf32, #tpu.memory_space<vmem>>, vector<1x40xf32>
    %36 = vector.broadcast %35 : vector<1x40xf32> to vector<128x40xf32>
    %37 = arith.mulf %34, %36 : vector<128x40xf32>
    %cst_20 = arith.constant dense<0.000000e+00> : vector<128xf32>
    %38 = vector.multi_reduction <add>, %37, %cst_20 [1] : vector<128x40xf32> to vector<128xf32>
    %39 = vector.shape_cast %38 : vector<128xf32> to vector<128x1xf32>
    %c0_21 = arith.constant 0 : index
    %c0_22 = arith.constant 0 : index
    %40 = vector.load %arg10[%c0_21, %c0_22] : memref<1x1xf32, #tpu.memory_space<vmem>>, vector<1x1xf32>
    %41 = vector.broadcast %40 : vector<1x1xf32> to vector<128x1xf32>
    %42 = arith.addf %39, %41 : vector<128x1xf32>
    %43 = vector.shape_cast %42 : vector<128x1xf32> to vector<16x8x1xf32>
    %44 = tpu.iota {dimensions = array<i32: 1>} : vector<1x8x1xi32>
    %c0_23 = arith.constant 0 : index
    %c0_24 = arith.constant 0 : index
    %45 = vector.load %arg3[%c0_23, %c0_24] : memref<16x1xi32, #tpu.memory_space<vmem>>, vector<16x1xi32>
    %46 = vector.shape_cast %45 : vector<16x1xi32> to vector<16x1x1xi32>
    %47 = vector.broadcast %44 : vector<1x8x1xi32> to vector<16x8x1xi32>
    %48 = vector.broadcast %46 : vector<16x1x1xi32> to vector<16x8x1xi32>
    %49 = arith.cmpi slt, %47, %48 : vector<16x8x1xi32>
    %cst_25 = arith.constant 0.000000e+00 : f32
    %50 = vector.broadcast %cst_25 : f32 to vector<16x8x1xf32>
    %51 = arith.select %49, %43, %50 : vector<16x8x1xi1>, vector<16x8x1xf32>
    %52 = vector.broadcast %51 : vector<16x8x1xf32> to vector<16x8x4xf32>
    %53 = arith.mulf %52, %1 : vector<16x8x4xf32>
    %cst_26 = arith.constant dense<0.000000e+00> : vector<16x4xf32>
    %54 = vector.multi_reduction <add>, %53, %cst_26 [1] : vector<16x8x4xf32> to vector<16x4xf32>
    %c0_27 = arith.constant 0 : index
    %c0_28 = arith.constant 0 : index
    %55 = vector.load %arg11[%c0_27, %c0_28] : memref<16x4xf32, #tpu.memory_space<vmem>>, vector<16x4xf32>
    tpu.vector_store %arg11[%c0_27, %c0_28], %54 {strides = array<i32>} : memref<16x4xf32, #tpu.memory_space<vmem>>, vector<16x4xf32>,
    return
  }
  func.func @transform_0(%arg0: i32) -> (i32, i32) {
    %c0_i32 = arith.constant 0 : i32
    %c0_i32_0 = arith.constant 0 : i32
    return %arg0, %c0_i32 : i32, i32
  }
  func.func @transform_1(%arg0: i32) -> (i32, i32, i32) {
    %c0_i32 = arith.constant 0 : i32
    %c0_i32_0 = arith.constant 0 : i32
    %c0_i32_1 = arith.constant 0 : i32
    return %arg0, %c0_i32, %c0_i32_0 : i32, i32, i32
  }
  func.func @transform_2(%arg0: i32) -> (i32, i32) {
    %c0_i32 = arith.constant 0 : i32
    %c0_i32_0 = arith.constant 0 : i32
    return %arg0, %c0_i32 : i32, i32
  }
  func.func @transform_3(%arg0: i32) -> (i32, i32) {
    %c0_i32 = arith.constant 0 : i32
    %c0_i32_0 = arith.constant 0 : i32
    %c0_i32_1 = arith.constant 0 : i32
    return %c0_i32, %c0_i32_0 : i32, i32
  }
  func.func @transform_4(%arg0: i32) -> (i32, i32) {
    %c0_i32 = arith.constant 0 : i32
    %c0_i32_0 = arith.constant 0 : i32
    %c0_i32_1 = arith.constant 0 : i32
    return %c0_i32, %c0_i32_0 : i32, i32
  }
  func.func @transform_5(%arg0: i32) -> (i32, i32) {
    %c0_i32 = arith.constant 0 : i32
    %c0_i32_0 = arith.constant 0 : i32
    %c0_i32_1 = arith.constant 0 : i32
    return %c0_i32, %c0_i32_0 : i32, i32
  }
  func.func @transform_6(%arg0: i32) -> (i32, i32) {
    %c0_i32 = arith.constant 0 : i32
    %c0_i32_0 = arith.constant 0 : i32
    %c0_i32_1 = arith.constant 0 : i32
    return %c0_i32, %c0_i32_0 : i32, i32
  }
  func.func @transform_7(%arg0: i32) -> (i32, i32) {
    %c0_i32 = arith.constant 0 : i32
    %c0_i32_0 = arith.constant 0 : i32
    %c0_i32_1 = arith.constant 0 : i32
    return %c0_i32, %c0_i32_0 : i32, i32
  }
  func.func @transform_8(%arg0: i32) -> (i32, i32) {
    %c0_i32 = arith.constant 0 : i32
    %c0_i32_0 = arith.constant 0 : i32
    %c0_i32_1 = arith.constant 0 : i32
    return %c0_i32, %c0_i32_0 : i32, i32
  }
  func.func @transform_9(%arg0: i32) -> (i32, i32) {
    %c0_i32 = arith.constant 0 : i32
    %c0_i32_0 = arith.constant 0 : i32
    %c0_i32_1 = arith.constant 0 : i32
    return %c0_i32, %c0_i32_0 : i32, i32
  }
  func.func @transform_10(%arg0: i32) -> (i32, i32) {
    %c0_i32 = arith.constant 0 : i32
    %c0_i32_0 = arith.constant 0 : i32
    return %arg0, %c0_i32 : i32, i32
  }
}

</mosaic_0001>

<llo_original>
// kernel: tpu_custom_call.1
$region0: #{tpu_custom_call.1}
  #allocation0 [shape = 'u32[]', space=smem, size = 0x4, offset = 0x4, fixed_abs, tag = 'smem constant byte address 0x4 - core index']
  #allocation1 [shape = 'u32[72,128]{1,0:T(1,128)}', space=vmem, size = 0x9000, scoped, tag = 'internal scratch']
  #allocation2 [shape = 'f32[1,1]{1,0:T(1,128)S(1)}', space=vmem, size = 0x200, scoped, tag = 'scoped memory for tpu_custom_call.1']
  %s0 = inlined_call_operand.vmem [shape: f32[16,4], index: 0, kind: input, shape index: {}]
  %s1 = inlined_call_operand.vmem [shape: f32[16,8,4], index: 1, kind: input, shape index: {}]
  %s2 = inlined_call_operand.vmem [shape: s32[16,1], index: 2, kind: input, shape index: {}]
  %s3 = inlined_call_operand.vmem [shape: f32[4,80], index: 3, kind: input, shape index: {}]
  %s4 = inlined_call_operand.vmem [shape: f32[8,80], index: 4, kind: input, shape index: {}]
  %s5 = inlined_call_operand.vmem [shape: f32[1,80], index: 5, kind: input, shape index: {}]
  %s6 = inlined_call_operand.vmem [shape: f32[80,40], index: 6, kind: input, shape index: {}]
  %s7 = inlined_call_operand.vmem [shape: f32[1,40], index: 7, kind: input, shape index: {}]
  %s8 = inlined_call_operand.vmem [shape: f32[1,40], index: 8, kind: input, shape index: {}]
  %s9 = inlined_call_operand.<no memory space> [shape: f32[1,1], index: 9, kind: input, shape index: {}]
  %s10 = inlined_call_operand.vmem [shape: f32[16,4], index: 10, kind: output, shape index: {}]
  %s11 = sld [smem:[#allocation0]]
  $region50: #{tpu_custom_call.1} parent=0
    _
  %s13 = ssub.s32 1, %s11
  %s14 = scalar_select 0, %s13, %s11
  %v15 = vstv %s9
  %16 = vst [vmem:[#allocation2] sm:$0x1] %v15
  // Predicated region
  $region2: #{tpu_custom_call.1} parent=0 // pred_check
    _
  $region3: #{tpu_custom_call.1} parent=0 // pred_check_branch
    %18 = sbr.rel (0) target = $region5
  $region4: #{tpu_custom_call.1} parent=0 // pred_region
    _
  $region5: #{tpu_custom_call.1} parent=0 // pred_fallthru
    _
  // Predicated region
  $region6: #{tpu_custom_call.1} parent=0 // pred_check
    _
  $region7: #{tpu_custom_call.1} parent=0 // pred_check_branch
    %20 = sbr.rel (0) target = $region9
  $region8: #{tpu_custom_call.1} parent=0 // pred_region
    _
  $region9: #{tpu_custom_call.1} parent=0 // pred_fallthru
    _
  // Predicated region
  $region10: #{tpu_custom_call.1} parent=0 // pred_check
    _
  $region11: #{tpu_custom_call.1} parent=0 // pred_check_branch
    %22 = sbr.rel (0) target = $region13
  $region12: #{tpu_custom_call.1} parent=0 // pred_region
    _
  $region13: #{tpu_custom_call.1} parent=0 // pred_fallthru
    _
  // Predicated region
  $region14: #{tpu_custom_call.1} parent=0 // pred_check
    _
  $region15: #{tpu_custom_call.1} parent=0 // pred_check_branch
    %24 = sbr.rel (0) target = $region17
  $region16: #{tpu_custom_call.1} parent=0 // pred_region
    _
  $region17: #{tpu_custom_call.1} parent=0 // pred_fallthru
    _
  // Predicated region
  $region18: #{tpu_custom_call.1} parent=0 // pred_check
    _
  $region19: #{tpu_custom_call.1} parent=0 // pred_check_branch
    %26 = sbr.rel (0) target = $region21
  $region20: #{tpu_custom_call.1} parent=0 // pred_region
    _
  $region21: #{tpu_custom_call.1} parent=0 // pred_fallthru
    _
  // Predicated region
  $region22: #{tpu_custom_call.1} parent=0 // pred_check
    _
  $region23: #{tpu_custom_call.1} parent=0 // pred_check_branch
    %28 = sbr.rel (0) target = $region25
  $region24: #{tpu_custom_call.1} parent=0 // pred_region
    _
  $region25: #{tpu_custom_call.1} parent=0 // pred_fallthru
    _
  // Predicated region
  $region26: #{tpu_custom_call.1} parent=0 // pred_check
    _
  $region27: #{tpu_custom_call.1} parent=0 // pred_check_branch
    %30 = sbr.rel (0) target = $region29
  $region28: #{tpu_custom_call.1} parent=0 // pred_region
    _
  $region29: #{tpu_custom_call.1} parent=0 // pred_fallthru
    _
  // Predicated region
  $region30: #{tpu_custom_call.1} parent=0 // pred_check
    _
  $region31: #{tpu_custom_call.1} parent=0 // pred_check_branch
    %32 = sbr.rel (0) target = $region33
  $region32: #{tpu_custom_call.1} parent=0 // pred_region
    _
  $region33: #{tpu_custom_call.1} parent=0 // pred_fallthru
    _
  // Predicated region
  $region34: #{tpu_custom_call.1} parent=0 // pred_check
    _
  $region35: #{tpu_custom_call.1} parent=0 // pred_check_branch
    %34 = sbr.rel (0) target = $region37
  $region36: #{tpu_custom_call.1} parent=0 // pred_region
    _
  $region37: #{tpu_custom_call.1} parent=0 // pred_fallthru
    _
  // Predicated region
  $region38: #{tpu_custom_call.1} parent=0 // pred_check
    _
  $region39: #{tpu_custom_call.1} parent=0 // pred_check_branch
    %36 = sbr.rel (0) target = $region41
  $region40: #{tpu_custom_call.1} parent=0 // pred_region
    _
  $region41: #{tpu_custom_call.1} parent=0 // pred_fallthru
    _
  %v37 = vld [vmem:[%s0] sm:$0xff]
  %v38 = vld [vmem:[%s0 + $0x8] sm:$0xff]
  %v39 = vld [vmem:[%s1] sm:$0xff]
  %v40 = vld [vmem:[%s1 + $0x8] sm:$0xff]
  %v41 = vld [vmem:[%s1 + $0x10] sm:$0xff]
  %v42 = vld [vmem:[%s1 + $0x18] sm:$0xff]
  %v43 = vld [vmem:[%s1 + $0x20] sm:$0xff]
  %v44 = vld [vmem:[%s1 + $0x28] sm:$0xff]
  %v45 = vld [vmem:[%s1 + $0x30] sm:$0xff]
  %v46 = vld [vmem:[%s1 + $0x38] sm:$0xff]
  %v47 = vld [vmem:[%s1 + $0x40] sm:$0xff]
  %v48 = vld [vmem:[%s1 + $0x48] sm:$0xff]
  %v49 = vld [vmem:[%s1 + $0x50] sm:$0xff]
  %v50 = vld [vmem:[%s1 + $0x58] sm:$0xff]
  %v51 = vld [vmem:[%s1 + $0x60] sm:$0xff]
  %v52 = vld [vmem:[%s1 + $0x68] sm:$0xff]
  %v53 = vld [vmem:[%s1 + $0x70] sm:$0xff]
  %v54 = vld [vmem:[%s1 + $0x78] sm:$0xff]
  %v57 = vrot.slane %v37, 1
  %v58 = vrot.slane %v37, 2
  %v59 = vrot.slane %v37, 3
  %v60 = vrot.slane %v37, 4
  %v61 = vrot.slane %v37, 5
  %v62 = vrot.slane %v37, 6
  %v63 = vrot.slane %v37, 7
  %v64 = vrot.slane %v38, 1
  %v65 = vrot.slane %v38, 2
  %v66 = vrot.slane %v38, 3
  %v67 = vrot.slane %v38, 4
  %v68 = vrot.slane %v38, 5
  %v69 = vrot.slane %v38, 6
  %v70 = vrot.slane %v38, 7
  %v71 = vperm.slane %v37, 0
  %v72 = vperm.slane %v57, 0
  %v73 = vperm.slane %v58, 0
  %v74 = vperm.slane %v59, 0
  %v75 = vperm.slane %v60, 0
  %v76 = vperm.slane %v61, 0
  %v77 = vperm.slane %v62, 0
  %v78 = vperm.slane %v63, 0
  %v79 = vperm.slane %v38, 0
  %v80 = vperm.slane %v64, 0
  %v81 = vperm.slane %v65, 0
  %v82 = vperm.slane %v66, 0
  %v83 = vperm.slane %v67, 0
  %v84 = vperm.slane %v68, 0
  %v85 = vperm.slane %v69, 0
  %v86 = vperm.slane %v70, 0
  %v103 = vmul.f32 %v71, %v39
  %v104 = vmul.f32 %v72, %v40
  %v105 = vmul.f32 %v73, %v41
  %v106 = vmul.f32 %v74, %v42
  %v107 = vmul.f32 %v75, %v43
  %v108 = vmul.f32 %v76, %v44
  %v109 = vmul.f32 %v77, %v45
  %v110 = vmul.f32 %v78, %v46
  %v111 = vmul.f32 %v79, %v47
  %v112 = vmul.f32 %v80, %v48
  %v113 = vmul.f32 %v81, %v49
  %v114 = vmul.f32 %v82, %v50
  %v115 = vmul.f32 %v83, %v51
  %v116 = vmul.f32 %v84, %v52
  %v117 = vmul.f32 %v85, %v53
  %v118 = vmul.f32 %v86, %v54
  %135 = vrot.lane.b32.xlu0 %v103, 4
  %v136 = vpop.permute.xlu0 %135
  %137 = vrot.lane.b32.xlu0 %v104, 4
  %v138 = vpop.permute.xlu0 %137
  %139 = vrot.lane.b32.xlu0 %v105, 4
  %v140 = vpop.permute.xlu0 %139
  %141 = vrot.lane.b32.xlu0 %v106, 4
  %v142 = vpop.permute.xlu0 %141
  %143 = vrot.lane.b32.xlu0 %v107, 4
  %v144 = vpop.permute.xlu0 %143
  %145 = vrot.lane.b32.xlu0 %v108, 4
  %v146 = vpop.permute.xlu0 %145
  %147 = vrot.lane.b32.xlu0 %v109, 4
  %v148 = vpop.permute.xlu0 %147
  %149 = vrot.lane.b32.xlu0 %v110, 4
  %v150 = vpop.permute.xlu0 %149
  %151 = vrot.lane.b32.xlu0 %v111, 4
  %v152 = vpop.permute.xlu0 %151
  %153 = vrot.lane.b32.xlu0 %v112, 4
  %v154 = vpop.permute.xlu0 %153
  %155 = vrot.lane.b32.xlu0 %v113, 4
  %v156 = vpop.permute.xlu0 %155
  %157 = vrot.lane.b32.xlu0 %v114, 4
  %v158 = vpop.permute.xlu0 %157
  %159 = vrot.lane.b32.xlu0 %v115, 4
  %v160 = vpop.permute.xlu0 %159
  %161 = vrot.lane.b32.xlu0 %v116, 4
  %v162 = vpop.permute.xlu0 %161
  %163 = vrot.lane.b32.xlu0 %v117, 4
  %v164 = vpop.permute.xlu0 %163
  %165 = vrot.lane.b32.xlu0 %v118, 4
  %v166 = vpop.permute.xlu0 %165
  %vm183 = vcmask 31744
  %v184 = vsel %vm183, %v39, %v136
  %v185 = vsel %vm183, %v40, %v138
  %v186 = vsel %vm183, %v41, %v140
  %v187 = vsel %vm183, %v42, %v142
  %v188 = vsel %vm183, %v43, %v144
  %v189 = vsel %vm183, %v44, %v146
  %v190 = vsel %vm183, %v45, %v148
  %v191 = vsel %vm183, %v46, %v150
  %v192 = vsel %vm183, %v47, %v152
  %v193 = vsel %vm183, %v48, %v154
  %v194 = vsel %vm183, %v49, %v156
  %v195 = vsel %vm183, %v50, %v158
  %v196 = vsel %vm183, %v51, %v160
  %v197 = vsel %vm183, %v52, %v162
  %v198 = vsel %vm183, %v53, %v164
  %v199 = vsel %vm183, %v54, %v166
  %v200 = vld [vmem:[%s3] sm:$0xf]
  %v201 = vld [vmem:[%s5] sm:$0x1]
  %v203 = vperm.slane %v201, 0
  %v205 = vsel %vm183, %v37, 0
  %v207 = vsel %vm183, %v38, 0
  %vm209 = vcmask 1043456
  %v211 = vsel %vm209, %v200, 0
  %213 = vmatpush.msra.mxu0 0.0
  %214 = vmatpush.msra.mxu0 0.0
  %215 = vmatpush.msra.mxu0 0.0
  %216 = vmatpush.msra.mxu0 0.0
  %217 = vmatpush.msra.mxu0 0.0
  %218 = vmatpush.msra.mxu0 0.0
  %219 = vmatpush.msra.mxu0 0.0
  %220 = vmatpush.msra.mxu0 0.0
  %221 = vmatpush.msra.mxu0 0.0
  %222 = vmatpush.msra.mxu0 0.0
  %223 = vmatpush.msra.mxu0 0.0
  %224 = vmatpush.msra.mxu0 0.0
  %225 = vmatpush.msra.mxu0 0.0
  %226 = vmatpush.msra.mxu0 0.0
  %227 = vmatpush.msra.mxu0 0.0
  %228 = vmatpush.msra.mxu0 %v211
  %229 = vmatmul.f32.gmra.mxu0 %v205
  %v230 = vpop.f32.mrf.mxu0
  %v231 = vadd.f32 %v203, %v230
  %232 = vmatmul.f32.gmra.mxu0 %v207
  %v233 = vpop.f32.mrf.mxu0
  %v234 = vadd.f32 %v203, %v233
  %235 = vdwg.mxu0
  %v236 = vld [vmem:[%s4] sm:$0xff]
  %vm237 = vcmask 64512
  %v239 = vsel %vm237, %v184, 0
  %v242 = vsel %vm237, %v185, 0
  %v245 = vsel %vm237, %v186, 0
  %v248 = vsel %vm237, %v187, 0
  %v251 = vsel %vm237, %v188, 0
  %v254 = vsel %vm237, %v189, 0
  %v257 = vsel %vm237, %v190, 0
  %v260 = vsel %vm237, %v191, 0
  %v263 = vsel %vm237, %v192, 0
  %v266 = vsel %vm237, %v193, 0
  %v269 = vsel %vm237, %v194, 0
  %v272 = vsel %vm237, %v195, 0
  %v275 = vsel %vm237, %v196, 0
  %v278 = vsel %vm237, %v197, 0
  %v281 = vsel %vm237, %v198, 0
  %v284 = vsel %vm237, %v199, 0
  %286 = vmatpush.msra.mxu0 0.0
  %287 = vmatpush.msra.mxu0 0.0
  %288 = vmatpush.msra.mxu0 0.0
  %289 = vmatpush.msra.mxu0 0.0
  %290 = vmatpush.msra.mxu0 0.0
  %291 = vmatpush.msra.mxu0 0.0
  %292 = vmatpush.msra.mxu0 0.0
  %293 = vmatpush.msra.mxu0 0.0
  %294 = vmatpush.msra.mxu0 0.0
  %295 = vmatpush.msra.mxu0 0.0
  %296 = vmatpush.msra.mxu0 0.0
  %297 = vmatpush.msra.mxu0 0.0
  %298 = vmatpush.msra.mxu0 0.0
  %299 = vmatpush.msra.mxu0 0.0
  %300 = vmatpush.msra.mxu0 0.0
  %301 = vmatpush.msra.mxu0 %v236
  %302 = vmatmul.f32.gmra.mxu0 %v239
  %v303 = vpop.f32.mrf.mxu0
  %v304 = vadd.f32 0.0, %v303
  %305 = vmatmul.f32.gmra.mxu0 %v242
  %v306 = vpop.f32.mrf.mxu0
  %v307 = vadd.f32 0.0, %v306
  %308 = vmatmul.f32.gmra.mxu0 %v245
  %v309 = vpop.f32.mrf.mxu0
  %v310 = vadd.f32 0.0, %v309
  %311 = vmatmul.f32.gmra.mxu0 %v248
  %v312 = vpop.f32.mrf.mxu0
  %v313 = vadd.f32 0.0, %v312
  %314 = vmatmul.f32.gmra.mxu0 %v251
  %v315 = vpop.f32.mrf.mxu0
  %v316 = vadd.f32 0.0, %v315
  %317 = vmatmul.f32.gmra.mxu0 %v254
  %v318 = vpop.f32.mrf.mxu0
  %v319 = vadd.f32 0.0, %v318
  %320 = vmatmul.f32.gmra.mxu0 %v257
  %v321 = vpop.f32.mrf.mxu0
  %v322 = vadd.f32 0.0, %v321
  %323 = vmatmul.f32.gmra.mxu0 %v260
  %v324 = vpop.f32.mrf.mxu0
  %v325 = vadd.f32 0.0, %v324
  %326 = vmatmul.f32.gmra.mxu0 %v263
  %v327 = vpop.f32.mrf.mxu0
  %v328 = vadd.f32 0.0, %v327
  %329 = vmatmul.f32.gmra.mxu0 %v266
  %v330 = vpop.f32.mrf.mxu0
  %v331 = vadd.f32 0.0, %v330
  %332 = vmatmul.f32.gmra.mxu0 %v269
  %v333 = vpop.f32.mrf.mxu0
  %v334 = vadd.f32 0.0, %v333
  %335 = vmatmul.f32.gmra.mxu0 %v272
  %v336 = vpop.f32.mrf.mxu0
  %v337 = vadd.f32 0.0, %v336
  %338 = vmatmul.f32.gmra.mxu0 %v275
  %v339 = vpop.f32.mrf.mxu0
  %v340 = vadd.f32 0.0, %v339
  %341 = vmatmul.f32.gmra.mxu0 %v278
  %v342 = vpop.f32.mrf.mxu0
  %v343 = vadd.f32 0.0, %v342
  %344 = vmatmul.f32.gmra.mxu0 %v281
  %v345 = vpop.f32.mrf.mxu0
  %v346 = vadd.f32 0.0, %v345
  %347 = vmatmul.f32.gmra.mxu0 %v284
  %v348 = vpop.f32.mrf.mxu0
  %v349 = vadd.f32 0.0, %v348
  %350 = vdwg.mxu0
  %v353 = vrot.slane %v231, 1
  %v354 = vrot.slane %v231, 2
  %v355 = vrot.slane %v231, 3
  %v356 = vrot.slane %v231, 4
  %v357 = vrot.slane %v231, 5
  %v358 = vrot.slane %v231, 6
  %v359 = vrot.slane %v231, 7
  %v360 = vrot.slane %v234, 1
  %v361 = vrot.slane %v234, 2
  %v362 = vrot.slane %v234, 3
  %v363 = vrot.slane %v234, 4
  %v364 = vrot.slane %v234, 5
  %v365 = vrot.slane %v234, 6
  %v366 = vrot.slane %v234, 7
  %v367 = vperm.slane %v231, 0
  %v368 = vperm.slane %v353, 0
  %v369 = vperm.slane %v354, 0
  %v370 = vperm.slane %v355, 0
  %v371 = vperm.slane %v356, 0
  %v372 = vperm.slane %v357, 0
  %v373 = vperm.slane %v358, 0
  %v374 = vperm.slane %v359, 0
  %v375 = vperm.slane %v234, 0
  %v376 = vperm.slane %v360, 0
  %v377 = vperm.slane %v361, 0
  %v378 = vperm.slane %v362, 0
  %v379 = vperm.slane %v363, 0
  %v380 = vperm.slane %v364, 0
  %v381 = vperm.slane %v365, 0
  %v382 = vperm.slane %v366, 0
  %v399 = vadd.f32 %v304, %v367
  %v400 = vadd.f32 %v307, %v368
  %v401 = vadd.f32 %v310, %v369
  %v402 = vadd.f32 %v313, %v370
  %v403 = vadd.f32 %v316, %v371
  %v404 = vadd.f32 %v319, %v372
  %v405 = vadd.f32 %v322, %v373
  %v406 = vadd.f32 %v325, %v374
  %v407 = vadd.f32 %v328, %v375
  %v408 = vadd.f32 %v331, %v376
  %v409 = vadd.f32 %v334, %v377
  %v410 = vadd.f32 %v337, %v378
  %v411 = vadd.f32 %v340, %v379
  %v412 = vadd.f32 %v343, %v380
  %v413 = vadd.f32 %v346, %v381
  %v414 = vadd.f32 %v349, %v382
  %v415 = vxor.u32 %v399, 2147483648
  %v416 = vxor.u32 %v400, 2147483648
  %v417 = vxor.u32 %v401, 2147483648
  %v418 = vxor.u32 %v402, 2147483648
  %v419 = vxor.u32 %v403, 2147483648
  %v420 = vxor.u32 %v404, 2147483648
  %v421 = vxor.u32 %v405, 2147483648
  %v422 = vxor.u32 %v406, 2147483648
  %v423 = vxor.u32 %v407, 2147483648
  %v424 = vxor.u32 %v408, 2147483648
  %v425 = vxor.u32 %v409, 2147483648
  %v426 = vxor.u32 %v410, 2147483648
  %v427 = vxor.u32 %v411, 2147483648
  %v428 = vxor.u32 %v412, 2147483648
  %v429 = vxor.u32 %v413, 2147483648
  %v430 = vxor.u32 %v414, 2147483648
  %v431 = vmul.f32 %v415, 1.442695
  %v432 = vpow.pop %v431
  %v433 = vmul.f32 %v416, 1.442695
  %v434 = vpow.pop %v433
  %v435 = vmul.f32 %v417, 1.442695
  %v436 = vpow.pop %v435
  %v437 = vmul.f32 %v418, 1.442695
  %v438 = vpow.pop %v437
  %v439 = vmul.f32 %v419, 1.442695
  %v440 = vpow.pop %v439
  %v441 = vmul.f32 %v420, 1.442695
  %v442 = vpow.pop %v441
  %v443 = vmul.f32 %v421, 1.442695
  %v444 = vpow.pop %v443
  %v445 = vmul.f32 %v422, 1.442695
  %v446 = vpow.pop %v445
  %v447 = vmul.f32 %v423, 1.442695
  %v448 = vpow.pop %v447
  %v449 = vmul.f32 %v424, 1.442695
  %v450 = vpow.pop %v449
  %v451 = vmul.f32 %v425, 1.442695
  %v452 = vpow.pop %v451
  %v453 = vmul.f32 %v426, 1.442695
  %v454 = vpow.pop %v453
  %v455 = vmul.f32 %v427, 1.442695
  %v456 = vpow.pop %v455
  %v457 = vmul.f32 %v428, 1.442695
  %v458 = vpow.pop %v457
  %v459 = vmul.f32 %v429, 1.442695
  %v460 = vpow.pop %v459
  %v461 = vmul.f32 %v430, 1.442695
  %v462 = vpow.pop %v461
  %v463 = vadd.f32 %v432, 1.0
  %v464 = vadd.f32 %v434, 1.0
  %v465 = vadd.f32 %v436, 1.0
  %v466 = vadd.f32 %v438, 1.0
  %v467 = vadd.f32 %v440, 1.0
  %v468 = vadd.f32 %v442, 1.0
  %v469 = vadd.f32 %v444, 1.0
  %v470 = vadd.f32 %v446, 1.0
  %v471 = vadd.f32 %v448, 1.0
  %v472 = vadd.f32 %v450, 1.0
  %v473 = vadd.f32 %v452, 1.0
  %v474 = vadd.f32 %v454, 1.0
  %v475 = vadd.f32 %v456, 1.0
  %v476 = vadd.f32 %v458, 1.0
  %v477 = vadd.f32 %v460, 1.0
  %v478 = vadd.f32 %v462, 1.0
  %v479 = vrcp.pop %v463
  %v480 = vmul.f32 %v463, %v479
  %v481 = vsub.f32 1.0, %v480
  %v482 = vmul.f32 %v479, %v481
  %v483 = vadd.f32 %v479, %v482
  %vm484 = vweird.f32 %v463
  %vm485 = vweird.f32 %v479
  %vm486 = vmor %vm484, %vm485
  %v487 = vsel %vm486, %v479, %v483
  %v488 = vand.u32 2147483647, %v463
  %vm489 = vcmp.eq.f32.partialorder %v488, 8.507059e+37
  %v490 = vand.u32 %v463, 2147483648
  %v491 = vor.u32 1.1754944e-38, %v490
  %v492 = vsel %vm489, %v491, %v487
  %v493 = vmul.f32 1.0, %v492
  %v494 = vrcp.pop %v464
  %v495 = vmul.f32 %v464, %v494
  %v496 = vsub.f32 1.0, %v495
  %v497 = vmul.f32 %v494, %v496
  %v498 = vadd.f32 %v494, %v497
  %vm499 = vweird.f32 %v464
  %vm500 = vweird.f32 %v494
  %vm501 = vmor %vm499, %vm500
  %v502 = vsel %vm501, %v494, %v498
  %v503 = vand.u32 2147483647, %v464
  %vm504 = vcmp.eq.f32.partialorder %v503, 8.507059e+37
  %v505 = vand.u32 %v464, 2147483648
  %v506 = vor.u32 1.1754944e-38, %v505
  %v507 = vsel %vm504, %v506, %v502
  %v508 = vmul.f32 1.0, %v507
  %v509 = vrcp.pop %v465
  %v510 = vmul.f32 %v465, %v509
  %v511 = vsub.f32 1.0, %v510
  %v512 = vmul.f32 %v509, %v511
  %v513 = vadd.f32 %v509, %v512
  %vm514 = vweird.f32 %v465
  %vm515 = vweird.f32 %v509
  %vm516 = vmor %vm514, %vm515
  %v517 = vsel %vm516, %v509, %v513
  %v518 = vand.u32 2147483647, %v465
  %vm519 = vcmp.eq.f32.partialorder %v518, 8.507059e+37
  %v520 = vand.u32 %v465, 2147483648
  %v521 = vor.u32 1.1754944e-38, %v520
  %v522 = vsel %vm519, %v521, %v517
  %v523 = vmul.f32 1.0, %v522
  %v524 = vrcp.pop %v466
  %v525 = vmul.f32 %v466, %v524
  %v526 = vsub.f32 1.0, %v525
  %v527 = vmul.f32 %v524, %v526
  %v528 = vadd.f32 %v524, %v527
  %vm529 = vweird.f32 %v466
  %vm530 = vweird.f32 %v524
  %vm531 = vmor %vm529, %vm530
  %v532 = vsel %vm531, %v524, %v528
  %v533 = vand.u32 2147483647, %v466
  %vm534 = vcmp.eq.f32.partialorder %v533, 8.507059e+37
  %v535 = vand.u32 %v466, 2147483648
  %v536 = vor.u32 1.1754944e-38, %v535
  %v537 = vsel %vm534, %v536, %v532
  %v538 = vmul.f32 1.0, %v537
  %v539 = vrcp.pop %v467
  %v540 = vmul.f32 %v467, %v539
  %v541 = vsub.f32 1.0, %v540
  %v542 = vmul.f32 %v539, %v541
  %v543 = vadd.f32 %v539, %v542
  %vm544 = vweird.f32 %v467
  %vm545 = vweird.f32 %v539
  %vm546 = vmor %vm544, %vm545
  %v547 = vsel %vm546, %v539, %v543
  %v548 = vand.u32 2147483647, %v467
  %vm549 = vcmp.eq.f32.partialorder %v548, 8.507059e+37
  %v550 = vand.u32 %v467, 2147483648
  %v551 = vor.u32 1.1754944e-38, %v550
  %v552 = vsel %vm549, %v551, %v547
  %v553 = vmul.f32 1.0, %v552
  %v554 = vrcp.pop %v468
  %v555 = vmul.f32 %v468, %v554
  %v556 = vsub.f32 1.0, %v555
  %v557 = vmul.f32 %v554, %v556
  %v558 = vadd.f32 %v554, %v557
  %vm559 = vweird.f32 %v468
  %vm560 = vweird.f32 %v554
  %vm561 = vmor %vm559, %vm560
  %v562 = vsel %vm561, %v554, %v558
  %v563 = vand.u32 2147483647, %v468
  %vm564 = vcmp.eq.f32.partialorder %v563, 8.507059e+37
  %v565 = vand.u32 %v468, 2147483648
  %v566 = vor.u32 1.1754944e-38, %v565
  %v567 = vsel %vm564, %v566, %v562
  %v568 = vmul.f32 1.0, %v567
  %v569 = vrcp.pop %v469
  %v570 = vmul.f32 %v469, %v569
  %v571 = vsub.f32 1.0, %v570
  %v572 = vmul.f32 %v569, %v571
  %v573 = vadd.f32 %v569, %v572
  %vm574 = vweird.f32 %v469
  %vm575 = vweird.f32 %v569
  %vm576 = vmor %vm574, %vm575
  %v577 = vsel %vm576, %v569, %v573
  %v578 = vand.u32 2147483647, %v469
  %vm579 = vcmp.eq.f32.partialorder %v578, 8.507059e+37
  %v580 = vand.u32 %v469, 2147483648
  %v581 = vor.u32 1.1754944e-38, %v580
  %v582 = vsel %vm579, %v581, %v577
  %v583 = vmul.f32 1.0, %v582
  %v584 = vrcp.pop %v470
  %v585 = vmul.f32 %v470, %v584
  %v586 = vsub.f32 1.0, %v585
  %v587 = vmul.f32 %v584, %v586
  %v588 = vadd.f32 %v584, %v587
  %vm589 = vweird.f32 %v470
  %vm590 = vweird.f32 %v584
  %vm591 = vmor %vm589, %vm590
  %v592 = vsel %vm591, %v584, %v588
  %v593 = vand.u32 2147483647, %v470
  %vm594 = vcmp.eq.f32.partialorder %v593, 8.507059e+37
  %v595 = vand.u32 %v470, 2147483648
  %v596 = vor.u32 1.1754944e-38, %v595
  %v597 = vsel %vm594, %v596, %v592
  %v598 = vmul.f32 1.0, %v597
  %v599 = vrcp.pop %v471
  %v600 = vmul.f32 %v471, %v599
  %v601 = vsub.f32 1.0, %v600
  %v602 = vmul.f32 %v599, %v601
  %v603 = vadd.f32 %v599, %v602
  %vm604 = vweird.f32 %v471
  %vm605 = vweird.f32 %v599
  %vm606 = vmor %vm604, %vm605
  %v607 = vsel %vm606, %v599, %v603
  %v608 = vand.u32 2147483647, %v471
  %vm609 = vcmp.eq.f32.partialorder %v608, 8.507059e+37
  %v610 = vand.u32 %v471, 2147483648
  %v611 = vor.u32 1.1754944e-38, %v610
  %v612 = vsel %vm609, %v611, %v607
  %v613 = vmul.f32 1.0, %v612
  %v614 = vrcp.pop %v472
  %v615 = vmul.f32 %v472, %v614
  %v616 = vsub.f32 1.0, %v615
  %v617 = vmul.f32 %v614, %v616
  %v618 = vadd.f32 %v614, %v617
  %vm619 = vweird.f32 %v472
  %vm620 = vweird.f32 %v614
  %vm621 = vmor %vm619, %vm620
  %v622 = vsel %vm621, %v614, %v618
  %v623 = vand.u32 2147483647, %v472
  %vm624 = vcmp.eq.f32.partialorder %v623, 8.507059e+37
  %v625 = vand.u32 %v472, 2147483648
  %v626 = vor.u32 1.1754944e-38, %v625
  %v627 = vsel %vm624, %v626, %v622
  %v628 = vmul.f32 1.0, %v627
  %v629 = vrcp.pop %v473
  %v630 = vmul.f32 %v473, %v629
  %v631 = vsub.f32 1.0, %v630
  %v632 = vmul.f32 %v629, %v631
  %v633 = vadd.f32 %v629, %v632
  %vm634 = vweird.f32 %v473
  %vm635 = vweird.f32 %v629
  %vm636 = vmor %vm634, %vm635
  %v637 = vsel %vm636, %v629, %v633
  %v638 = vand.u32 2147483647, %v473
  %vm639 = vcmp.eq.f32.partialorder %v638, 8.507059e+37
  %v640 = vand.u32 %v473, 2147483648
  %v641 = vor.u32 1.1754944e-38, %v640
  %v642 = vsel %vm639, %v641, %v637
  %v643 = vmul.f32 1.0, %v642
  %v644 = vrcp.pop %v474
  %v645 = vmul.f32 %v474, %v644
  %v646 = vsub.f32 1.0, %v645
  %v647 = vmul.f32 %v644, %v646
  %v648 = vadd.f32 %v644, %v647
  %vm649 = vweird.f32 %v474
  %vm650 = vweird.f32 %v644
  %vm651 = vmor %vm649, %vm650
  %v652 = vsel %vm651, %v644, %v648
  %v653 = vand.u32 2147483647, %v474
  %vm654 = vcmp.eq.f32.partialorder %v653, 8.507059e+37
  %v655 = vand.u32 %v474, 2147483648
  %v656 = vor.u32 1.1754944e-38, %v655
  %v657 = vsel %vm654, %v656, %v652
  %v658 = vmul.f32 1.0, %v657
  %v659 = vrcp.pop %v475
  %v660 = vmul.f32 %v475, %v659
  %v661 = vsub.f32 1.0, %v660
  %v662 = vmul.f32 %v659, %v661
  %v663 = vadd.f32 %v659, %v662
  %vm664 = vweird.f32 %v475
  %vm665 = vweird.f32 %v659
  %vm666 = vmor %vm664, %vm665
  %v667 = vsel %vm666, %v659, %v663
  %v668 = vand.u32 2147483647, %v475
  %vm669 = vcmp.eq.f32.partialorder %v668, 8.507059e+37
  %v670 = vand.u32 %v475, 2147483648
  %v671 = vor.u32 1.1754944e-38, %v670
  %v672 = vsel %vm669, %v671, %v667
  %v673 = vmul.f32 1.0, %v672
  %v674 = vrcp.pop %v476
  %v675 = vmul.f32 %v476, %v674
  %v676 = vsub.f32 1.0, %v675
  %v677 = vmul.f32 %v674, %v676
  %v678 = vadd.f32 %v674, %v677
  %vm679 = vweird.f32 %v476
  %vm680 = vweird.f32 %v674
  %vm681 = vmor %vm679, %vm680
  %v682 = vsel %vm681, %v674, %v678
  %v683 = vand.u32 2147483647, %v476
  %vm684 = vcmp.eq.f32.partialorder %v683, 8.507059e+37
  %v685 = vand.u32 %v476, 2147483648
  %v686 = vor.u32 1.1754944e-38, %v685
  %v687 = vsel %vm684, %v686, %v682
  %v688 = vmul.f32 1.0, %v687
  %v689 = vrcp.pop %v477
  %v690 = vmul.f32 %v477, %v689
  %v691 = vsub.f32 1.0, %v690
  %v692 = vmul.f32 %v689, %v691
  %v693 = vadd.f32 %v689, %v692
  %vm694 = vweird.f32 %v477
  %vm695 = vweird.f32 %v689
  %vm696 = vmor %vm694, %vm695
  %v697 = vsel %vm696, %v689, %v693
  %v698 = vand.u32 2147483647, %v477
  %vm699 = vcmp.eq.f32.partialorder %v698, 8.507059e+37
  %v700 = vand.u32 %v477, 2147483648
  %v701 = vor.u32 1.1754944e-38, %v700
  %v702 = vsel %vm699, %v701, %v697
  %v703 = vmul.f32 1.0, %v702
  %v704 = vrcp.pop %v478
  %v705 = vmul.f32 %v478, %v704
  %v706 = vsub.f32 1.0, %v705
  %v707 = vmul.f32 %v704, %v706
  %v708 = vadd.f32 %v704, %v707
  %vm709 = vweird.f32 %v478
  %vm710 = vweird.f32 %v704
  %vm711 = vmor %vm709, %vm710
  %v712 = vsel %vm711, %v704, %v708
  %v713 = vand.u32 2147483647, %v478
  %vm714 = vcmp.eq.f32.partialorder %v713, 8.507059e+37
  %v715 = vand.u32 %v478, 2147483648
  %v716 = vor.u32 1.1754944e-38, %v715
  %v717 = vsel %vm714, %v716, %v712
  %v718 = vmul.f32 1.0, %v717
  %v719 = vld [vmem:[%s6] sm:$0xff]
  %v720 = vld [vmem:[%s6 + $0x8] sm:$0xff]
  %v721 = vld [vmem:[%s6 + $0x10] sm:$0xff]
  %v722 = vld [vmem:[%s6 + $0x18] sm:$0xff]
  %v723 = vld [vmem:[%s6 + $0x20] sm:$0xff]
  %v724 = vld [vmem:[%s6 + $0x28] sm:$0xff]
  %v725 = vld [vmem:[%s6 + $0x30] sm:$0xff]
  %v726 = vld [vmem:[%s6 + $0x38] sm:$0xff]
  %v727 = vld [vmem:[%s6 + $0x40] sm:$0xff]
  %v728 = vld [vmem:[%s6 + $0x48] sm:$0xff]
  %v729 = vld [vmem:[%s7] sm:$0x1]
  %v731 = vperm.slane %v729, 0
  %vm733 = vcmask 654336
  %v735 = vsel %vm733, %v493, 0
  %v738 = vsel %vm733, %v508, 0
  %v741 = vsel %vm733, %v523, 0
  %v744 = vsel %vm733, %v538, 0
  %v747 = vsel %vm733, %v553, 0
  %v750 = vsel %vm733, %v568, 0
  %v753 = vsel %vm733, %v583, 0
  %v756 = vsel %vm733, %v598, 0
  %v759 = vsel %vm733, %v613, 0
  %v762 = vsel %vm733, %v628, 0
  %v765 = vsel %vm733, %v643, 0
  %v768 = vsel %vm733, %v658, 0
  %v771 = vsel %vm733, %v673, 0
  %v774 = vsel %vm733, %v688, 0
  %v777 = vsel %vm733, %v703, 0
  %v780 = vsel %vm733, %v718, 0
  %782 = vmatpush.msra.mxu0 0.0
  %783 = vmatpush.msra.mxu0 0.0
  %784 = vmatpush.msra.mxu0 0.0
  %785 = vmatpush.msra.mxu0 0.0
  %786 = vmatpush.msra.mxu0 0.0
  %787 = vmatpush.msra.mxu0 0.0
  %788 = vmatpush.msra.mxu0 %v728
  %789 = vmatpush.msra.mxu0 %v727
  %790 = vmatpush.msra.mxu0 %v726
  %791 = vmatpush.msra.mxu0 %v725
  %792 = vmatpush.msra.mxu0 %v724
  %793 = vmatpush.msra.mxu0 %v723
  %794 = vmatpush.msra.mxu0 %v722
  %795 = vmatpush.msra.mxu0 %v721
  %796 = vmatpush.msra.mxu0 %v720
  %797 = vmatpush.msra.mxu0 %v719
  %798 = vmatmul.f32.gmra.mxu0 %v735
  %v799 = vpop.f32.mrf.mxu0
  %v800 = vadd.f32 %v731, %v799
  %801 = vmatmul.f32.gmra.mxu0 %v738
  %v802 = vpop.f32.mrf.mxu0
  %v803 = vadd.f32 %v731, %v802
  %804 = vmatmul.f32.gmra.mxu0 %v741
  %v805 = vpop.f32.mrf.mxu0
  %v806 = vadd.f32 %v731, %v805
  %807 = vmatmul.f32.gmra.mxu0 %v744
  %v808 = vpop.f32.mrf.mxu0
  %v809 = vadd.f32 %v731, %v808
  %810 = vmatmul.f32.gmra.mxu0 %v747
  %v811 = vpop.f32.mrf.mxu0
  %v812 = vadd.f32 %v731, %v811
  %813 = vmatmul.f32.gmra.mxu0 %v750
  %v814 = vpop.f32.mrf.mxu0
  %v815 = vadd.f32 %v731, %v814
  %816 = vmatmul.f32.gmra.mxu0 %v753
  %v817 = vpop.f32.mrf.mxu0
  %v818 = vadd.f32 %v731, %v817
  %819 = vmatmul.f32.gmra.mxu0 %v756
  %v820 = vpop.f32.mrf.mxu0
  %v821 = vadd.f32 %v731, %v820
  %822 = vmatmul.f32.gmra.mxu0 %v759
  %v823 = vpop.f32.mrf.mxu0
  %v824 = vadd.f32 %v731, %v823
  %825 = vmatmul.f32.gmra.mxu0 %v762
  %v826 = vpop.f32.mrf.mxu0
  %v827 = vadd.f32 %v731, %v826
  %828 = vmatmul.f32.gmra.mxu0 %v765
  %v829 = vpop.f32.mrf.mxu0
  %v830 = vadd.f32 %v731, %v829
  %831 = vmatmul.f32.gmra.mxu0 %v768
  %v832 = vpop.f32.mrf.mxu0
  %v833 = vadd.f32 %v731, %v832
  %834 = vmatmul.f32.gmra.mxu0 %v771
  %v835 = vpop.f32.mrf.mxu0
  %v836 = vadd.f32 %v731, %v835
  %837 = vmatmul.f32.gmra.mxu0 %v774
  %v838 = vpop.f32.mrf.mxu0
  %v839 = vadd.f32 %v731, %v838
  %840 = vmatmul.f32.gmra.mxu0 %v777
  %v841 = vpop.f32.mrf.mxu0
  %v842 = vadd.f32 %v731, %v841
  %843 = vmatmul.f32.gmra.mxu0 %v780
  %v844 = vpop.f32.mrf.mxu0
  %v845 = vadd.f32 %v731, %v844
  %846 = vdwg.mxu0
  %v847 = vxor.u32 %v800, 2147483648
  %v848 = vxor.u32 %v803, 2147483648
  %v849 = vxor.u32 %v806, 2147483648
  %v850 = vxor.u32 %v809, 2147483648
  %v851 = vxor.u32 %v812, 2147483648
  %v852 = vxor.u32 %v815, 2147483648
  %v853 = vxor.u32 %v818, 2147483648
  %v854 = vxor.u32 %v821, 2147483648
  %v855 = vxor.u32 %v824, 2147483648
  %v856 = vxor.u32 %v827, 2147483648
  %v857 = vxor.u32 %v830, 2147483648
  %v858 = vxor.u32 %v833, 2147483648
  %v859 = vxor.u32 %v836, 2147483648
  %v860 = vxor.u32 %v839, 2147483648
  %v861 = vxor.u32 %v842, 2147483648
  %v862 = vxor.u32 %v845, 2147483648
  %v863 = vmul.f32 %v847, 1.442695
  %v864 = vpow.pop %v863
  %v865 = vmul.f32 %v848, 1.442695
  %v866 = vpow.pop %v865
  %v867 = vmul.f32 %v849, 1.442695
  %v868 = vpow.pop %v867
  %v869 = vmul.f32 %v850, 1.442695
  %v870 = vpow.pop %v869
  %v871 = vmul.f32 %v851, 1.442695
  %v872 = vpow.pop %v871
  %v873 = vmul.f32 %v852, 1.442695
  %v874 = vpow.pop %v873
  %v875 = vmul.f32 %v853, 1.442695
  %v876 = vpow.pop %v875
  %v877 = vmul.f32 %v854, 1.442695
  %v878 = vpow.pop %v877
  %v879 = vmul.f32 %v855, 1.442695
  %v880 = vpow.pop %v879
  %v881 = vmul.f32 %v856, 1.442695
  %v882 = vpow.pop %v881
  %v883 = vmul.f32 %v857, 1.442695
  %v884 = vpow.pop %v883
  %v885 = vmul.f32 %v858, 1.442695
  %v886 = vpow.pop %v885
  %v887 = vmul.f32 %v859, 1.442695
  %v888 = vpow.pop %v887
  %v889 = vmul.f32 %v860, 1.442695
  %v890 = vpow.pop %v889
  %v891 = vmul.f32 %v861, 1.442695
  %v892 = vpow.pop %v891
  %v893 = vmul.f32 %v862, 1.442695
  %v894 = vpow.pop %v893
  %v895 = vadd.f32 %v864, 1.0
  %v896 = vadd.f32 %v866, 1.0
  %v897 = vadd.f32 %v868, 1.0
  %v898 = vadd.f32 %v870, 1.0
  %v899 = vadd.f32 %v872, 1.0
  %v900 = vadd.f32 %v874, 1.0
  %v901 = vadd.f32 %v876, 1.0
  %v902 = vadd.f32 %v878, 1.0
  %v903 = vadd.f32 %v880, 1.0
  %v904 = vadd.f32 %v882, 1.0
  %v905 = vadd.f32 %v884, 1.0
  %v906 = vadd.f32 %v886, 1.0
  %v907 = vadd.f32 %v888, 1.0
  %v908 = vadd.f32 %v890, 1.0
  %v909 = vadd.f32 %v892, 1.0
  %v910 = vadd.f32 %v894, 1.0
  %v911 = vrcp.pop %v895
  %v912 = vmul.f32 %v895, %v911
  %v913 = vsub.f32 1.0, %v912
  %v914 = vmul.f32 %v911, %v913
  %v915 = vadd.f32 %v911, %v914
  %vm916 = vweird.f32 %v895
  %vm917 = vweird.f32 %v911
  %vm918 = vmor %vm916, %vm917
  %v919 = vsel %vm918, %v911, %v915
  %v920 = vand.u32 2147483647, %v895
  %vm921 = vcmp.eq.f32.partialorder %v920, 8.507059e+37
  %v922 = vand.u32 %v895, 2147483648
  %v923 = vor.u32 1.1754944e-38, %v922
  %v924 = vsel %vm921, %v923, %v919
  %v925 = vmul.f32 1.0, %v924
  %v926 = vrcp.pop %v896
  %v927 = vmul.f32 %v896, %v926
  %v928 = vsub.f32 1.0, %v927
  %v929 = vmul.f32 %v926, %v928
  %v930 = vadd.f32 %v926, %v929
  %vm931 = vweird.f32 %v896
  %vm932 = vweird.f32 %v926
  %vm933 = vmor %vm931, %vm932
  %v934 = vsel %vm933, %v926, %v930
  %v935 = vand.u32 2147483647, %v896
  %vm936 = vcmp.eq.f32.partialorder %v935, 8.507059e+37
  %v937 = vand.u32 %v896, 2147483648
  %v938 = vor.u32 1.1754944e-38, %v937
  %v939 = vsel %vm936, %v938, %v934
  %v940 = vmul.f32 1.0, %v939
  %v941 = vrcp.pop %v897
  %v942 = vmul.f32 %v897, %v941
  %v943 = vsub.f32 1.0, %v942
  %v944 = vmul.f32 %v941, %v943
  %v945 = vadd.f32 %v941, %v944
  %vm946 = vweird.f32 %v897
  %vm947 = vweird.f32 %v941
  %vm948 = vmor %vm946, %vm947
  %v949 = vsel %vm948, %v941, %v945
  %v950 = vand.u32 2147483647, %v897
  %vm951 = vcmp.eq.f32.partialorder %v950, 8.507059e+37
  %v952 = vand.u32 %v897, 2147483648
  %v953 = vor.u32 1.1754944e-38, %v952
  %v954 = vsel %vm951, %v953, %v949
  %v955 = vmul.f32 1.0, %v954
  %v956 = vrcp.pop %v898
  %v957 = vmul.f32 %v898, %v956
  %v958 = vsub.f32 1.0, %v957
  %v959 = vmul.f32 %v956, %v958
  %v960 = vadd.f32 %v956, %v959
  %vm961 = vweird.f32 %v898
  %vm962 = vweird.f32 %v956
  %vm963 = vmor %vm961, %vm962
  %v964 = vsel %vm963, %v956, %v960
  %v965 = vand.u32 2147483647, %v898
  %vm966 = vcmp.eq.f32.partialorder %v965, 8.507059e+37
  %v967 = vand.u32 %v898, 2147483648
  %v968 = vor.u32 1.1754944e-38, %v967
  %v969 = vsel %vm966, %v968, %v964
  %v970 = vmul.f32 1.0, %v969
  %v971 = vrcp.pop %v899
  %v972 = vmul.f32 %v899, %v971
  %v973 = vsub.f32 1.0, %v972
  %v974 = vmul.f32 %v971, %v973
  %v975 = vadd.f32 %v971, %v974
  %vm976 = vweird.f32 %v899
  %vm977 = vweird.f32 %v971
  %vm978 = vmor %vm976, %vm977
  %v979 = vsel %vm978, %v971, %v975
  %v980 = vand.u32 2147483647, %v899
  %vm981 = vcmp.eq.f32.partialorder %v980, 8.507059e+37
  %v982 = vand.u32 %v899, 2147483648
  %v983 = vor.u32 1.1754944e-38, %v982
  %v984 = vsel %vm981, %v983, %v979
  %v985 = vmul.f32 1.0, %v984
  %v986 = vrcp.pop %v900
  %v987 = vmul.f32 %v900, %v986
  %v988 = vsub.f32 1.0, %v987
  %v989 = vmul.f32 %v986, %v988
  %v990 = vadd.f32 %v986, %v989
  %vm991 = vweird.f32 %v900
  %vm992 = vweird.f32 %v986
  %vm993 = vmor %vm991, %vm992
  %v994 = vsel %vm993, %v986, %v990
  %v995 = vand.u32 2147483647, %v900
  %vm996 = vcmp.eq.f32.partialorder %v995, 8.507059e+37
  %v997 = vand.u32 %v900, 2147483648
  %v998 = vor.u32 1.1754944e-38, %v997
  %v999 = vsel %vm996, %v998, %v994
  %v1000 = vmul.f32 1.0, %v999
  %v1001 = vrcp.pop %v901
  %v1002 = vmul.f32 %v901, %v1001
  %v1003 = vsub.f32 1.0, %v1002
  %v1004 = vmul.f32 %v1001, %v1003
  %v1005 = vadd.f32 %v1001, %v1004
  %vm1006 = vweird.f32 %v901
  %vm1007 = vweird.f32 %v1001
  %vm1008 = vmor %vm1006, %vm1007
  %v1009 = vsel %vm1008, %v1001, %v1005
  %v1010 = vand.u32 2147483647, %v901
  %vm1011 = vcmp.eq.f32.partialorder %v1010, 8.507059e+37
  %v1012 = vand.u32 %v901, 2147483648
  %v1013 = vor.u32 1.1754944e-38, %v1012
  %v1014 = vsel %vm1011, %v1013, %v1009
  %v1015 = vmul.f32 1.0, %v1014
  %v1016 = vrcp.pop %v902
  %v1017 = vmul.f32 %v902, %v1016
  %v1018 = vsub.f32 1.0, %v1017
  %v1019 = vmul.f32 %v1016, %v1018
  %v1020 = vadd.f32 %v1016, %v1019
  %vm1021 = vweird.f32 %v902
  %vm1022 = vweird.f32 %v1016
  %vm1023 = vmor %vm1021, %vm1022
  %v1024 = vsel %vm1023, %v1016, %v1020
  %v1025 = vand.u32 2147483647, %v902
  %vm1026 = vcmp.eq.f32.partialorder %v1025, 8.507059e+37
  %v1027 = vand.u32 %v902, 2147483648
  %v1028 = vor.u32 1.1754944e-38, %v1027
  %v1029 = vsel %vm1026, %v1028, %v1024
  %v1030 = vmul.f32 1.0, %v1029
  %v1031 = vrcp.pop %v903
  %v1032 = vmul.f32 %v903, %v1031
  %v1033 = vsub.f32 1.0, %v1032
  %v1034 = vmul.f32 %v1031, %v1033
  %v1035 = vadd.f32 %v1031, %v1034
  %vm1036 = vweird.f32 %v903
  %vm1037 = vweird.f32 %v1031
  %vm1038 = vmor %vm1036, %vm1037
  %v1039 = vsel %vm1038, %v1031, %v1035
  %v1040 = vand.u32 2147483647, %v903
  %vm1041 = vcmp.eq.f32.partialorder %v1040, 8.507059e+37
  %v1042 = vand.u32 %v903, 2147483648
  %v1043 = vor.u32 1.1754944e-38, %v1042
  %v1044 = vsel %vm1041, %v1043, %v1039
  %v1045 = vmul.f32 1.0, %v1044
  %v1046 = vrcp.pop %v904
  %v1047 = vmul.f32 %v904, %v1046
  %v1048 = vsub.f32 1.0, %v1047
  %v1049 = vmul.f32 %v1046, %v1048
  %v1050 = vadd.f32 %v1046, %v1049
  %vm1051 = vweird.f32 %v904
  %vm1052 = vweird.f32 %v1046
  %vm1053 = vmor %vm1051, %vm1052
  %v1054 = vsel %vm1053, %v1046, %v1050
  %v1055 = vand.u32 2147483647, %v904
  %vm1056 = vcmp.eq.f32.partialorder %v1055, 8.507059e+37
  %v1057 = vand.u32 %v904, 2147483648
  %v1058 = vor.u32 1.1754944e-38, %v1057
  %v1059 = vsel %vm1056, %v1058, %v1054
  %v1060 = vmul.f32 1.0, %v1059
  %v1061 = vrcp.pop %v905
  %v1062 = vmul.f32 %v905, %v1061
  %v1063 = vsub.f32 1.0, %v1062
  %v1064 = vmul.f32 %v1061, %v1063
  %v1065 = vadd.f32 %v1061, %v1064
  %vm1066 = vweird.f32 %v905
  %vm1067 = vweird.f32 %v1061
  %vm1068 = vmor %vm1066, %vm1067
  %v1069 = vsel %vm1068, %v1061, %v1065
  %v1070 = vand.u32 2147483647, %v905
  %vm1071 = vcmp.eq.f32.partialorder %v1070, 8.507059e+37
  %v1072 = vand.u32 %v905, 2147483648
  %v1073 = vor.u32 1.1754944e-38, %v1072
  %v1074 = vsel %vm1071, %v1073, %v1069
  %v1075 = vmul.f32 1.0, %v1074
  %v1076 = vrcp.pop %v906
  %v1077 = vmul.f32 %v906, %v1076
  %v1078 = vsub.f32 1.0, %v1077
  %v1079 = vmul.f32 %v1076, %v1078
  %v1080 = vadd.f32 %v1076, %v1079
  %vm1081 = vweird.f32 %v906
  %vm1082 = vweird.f32 %v1076
  %vm1083 = vmor %vm1081, %vm1082
  %v1084 = vsel %vm1083, %v1076, %v1080
  %v1085 = vand.u32 2147483647, %v906
  %vm1086 = vcmp.eq.f32.partialorder %v1085, 8.507059e+37
  %v1087 = vand.u32 %v906, 2147483648
  %v1088 = vor.u32 1.1754944e-38, %v1087
  %v1089 = vsel %vm1086, %v1088, %v1084
  %v1090 = vmul.f32 1.0, %v1089
  %v1091 = vrcp.pop %v907
  %v1092 = vmul.f32 %v907, %v1091
  %v1093 = vsub.f32 1.0, %v1092
  %v1094 = vmul.f32 %v1091, %v1093
  %v1095 = vadd.f32 %v1091, %v1094
  %vm1096 = vweird.f32 %v907
  %vm1097 = vweird.f32 %v1091
  %vm1098 = vmor %vm1096, %vm1097
  %v1099 = vsel %vm1098, %v1091, %v1095
  %v1100 = vand.u32 2147483647, %v907
  %vm1101 = vcmp.eq.f32.partialorder %v1100, 8.507059e+37
  %v1102 = vand.u32 %v907, 2147483648
  %v1103 = vor.u32 1.1754944e-38, %v1102
  %v1104 = vsel %vm1101, %v1103, %v1099
  %v1105 = vmul.f32 1.0, %v1104
  %v1106 = vrcp.pop %v908
  %v1107 = vmul.f32 %v908, %v1106
  %v1108 = vsub.f32 1.0, %v1107
  %v1109 = vmul.f32 %v1106, %v1108
  %v1110 = vadd.f32 %v1106, %v1109
  %vm1111 = vweird.f32 %v908
  %vm1112 = vweird.f32 %v1106
  %vm1113 = vmor %vm1111, %vm1112
  %v1114 = vsel %vm1113, %v1106, %v1110
  %v1115 = vand.u32 2147483647, %v908
  %vm1116 = vcmp.eq.f32.partialorder %v1115, 8.507059e+37
  %v1117 = vand.u32 %v908, 2147483648
  %v1118 = vor.u32 1.1754944e-38, %v1117
  %v1119 = vsel %vm1116, %v1118, %v1114
  %v1120 = vmul.f32 1.0, %v1119
  %v1121 = vrcp.pop %v909
  %v1122 = vmul.f32 %v909, %v1121
  %v1123 = vsub.f32 1.0, %v1122
  %v1124 = vmul.f32 %v1121, %v1123
  %v1125 = vadd.f32 %v1121, %v1124
  %vm1126 = vweird.f32 %v909
  %vm1127 = vweird.f32 %v1121
  %vm1128 = vmor %vm1126, %vm1127
  %v1129 = vsel %vm1128, %v1121, %v1125
  %v1130 = vand.u32 2147483647, %v909
  %vm1131 = vcmp.eq.f32.partialorder %v1130, 8.507059e+37
  %v1132 = vand.u32 %v909, 2147483648
  %v1133 = vor.u32 1.1754944e-38, %v1132
  %v1134 = vsel %vm1131, %v1133, %v1129
  %v1135 = vmul.f32 1.0, %v1134
  %v1136 = vrcp.pop %v910
  %v1137 = vmul.f32 %v910, %v1136
  %v1138 = vsub.f32 1.0, %v1137
  %v1139 = vmul.f32 %v1136, %v1138
  %v1140 = vadd.f32 %v1136, %v1139
  %vm1141 = vweird.f32 %v910
  %vm1142 = vweird.f32 %v1136
  %vm1143 = vmor %vm1141, %vm1142
  %v1144 = vsel %vm1143, %v1136, %v1140
  %v1145 = vand.u32 2147483647, %v910
  %vm1146 = vcmp.eq.f32.partialorder %v1145, 8.507059e+37
  %v1147 = vand.u32 %v910, 2147483648
  %v1148 = vor.u32 1.1754944e-38, %v1147
  %v1149 = vsel %vm1146, %v1148, %v1144
  %v1150 = vmul.f32 1.0, %v1149
  %v1151 = vld [vmem:[%s8] sm:$0x1]
  %v1153 = vperm.slane %v1151, 0
  %v1155 = vmul.f32 %v925, %v1153
  %v1156 = vmul.f32 %v940, %v1153
  %v1157 = vmul.f32 %v955, %v1153
  %v1158 = vmul.f32 %v970, %v1153
  %v1159 = vmul.f32 %v985, %v1153
  %v1160 = vmul.f32 %v1000, %v1153
  %v1161 = vmul.f32 %v1015, %v1153
  %v1162 = vmul.f32 %v1030, %v1153
  %v1163 = vmul.f32 %v1045, %v1153
  %v1164 = vmul.f32 %v1060, %v1153
  %v1165 = vmul.f32 %v1075, %v1153
  %v1166 = vmul.f32 %v1090, %v1153
  %v1167 = vmul.f32 %v1105, %v1153
  %v1168 = vmul.f32 %v1120, %v1153
  %v1169 = vmul.f32 %v1135, %v1153
  %v1170 = vmul.f32 %v1150, %v1153
  %vm1171 = vcmask 326656
  %v1172 = vsel %vm1171, %v1155, 0.0
  %1173 = vadd.xlane.f32.xlu0 %v1172
  %v1174 = vpop.xlane.xlu0 %1173
  %v1175 = vsel %vm1171, %v1156, 0.0
  %1176 = vadd.xlane.f32.xlu0 %v1175
  %v1177 = vpop.xlane.xlu0 %1176
  %v1178 = vsel %vm1171, %v1157, 0.0
  %1179 = vadd.xlane.f32.xlu0 %v1178
  %v1180 = vpop.xlane.xlu0 %1179
  %v1181 = vsel %vm1171, %v1158, 0.0
  %1182 = vadd.xlane.f32.xlu0 %v1181
  %v1183 = vpop.xlane.xlu0 %1182
  %v1184 = vsel %vm1171, %v1159, 0.0
  %1185 = vadd.xlane.f32.xlu0 %v1184
  %v1186 = vpop.xlane.xlu0 %1185
  %v1187 = vsel %vm1171, %v1160, 0.0
  %1188 = vadd.xlane.f32.xlu0 %v1187
  %v1189 = vpop.xlane.xlu0 %1188
  %v1190 = vsel %vm1171, %v1161, 0.0
  %1191 = vadd.xlane.f32.xlu0 %v1190
  %v1192 = vpop.xlane.xlu0 %1191
  %v1193 = vsel %vm1171, %v1162, 0.0
  %1194 = vadd.xlane.f32.xlu0 %v1193
  %v1195 = vpop.xlane.xlu0 %1194
  %v1196 = vsel %vm1171, %v1163, 0.0
  %1197 = vadd.xlane.f32.xlu0 %v1196
  %v1198 = vpop.xlane.xlu0 %1197
  %v1199 = vsel %vm1171, %v1164, 0.0
  %1200 = vadd.xlane.f32.xlu0 %v1199
  %v1201 = vpop.xlane.xlu0 %1200
  %v1202 = vsel %vm1171, %v1165, 0.0
  %1203 = vadd.xlane.f32.xlu0 %v1202
  %v1204 = vpop.xlane.xlu0 %1203
  %v1205 = vsel %vm1171, %v1166, 0.0
  %1206 = vadd.xlane.f32.xlu0 %v1205
  %v1207 = vpop.xlane.xlu0 %1206
  %v1208 = vsel %vm1171, %v1167, 0.0
  %1209 = vadd.xlane.f32.xlu0 %v1208
  %v1210 = vpop.xlane.xlu0 %1209
  %v1211 = vsel %vm1171, %v1168, 0.0
  %1212 = vadd.xlane.f32.xlu0 %v1211
  %v1213 = vpop.xlane.xlu0 %1212
  %v1214 = vsel %vm1171, %v1169, 0.0
  %1215 = vadd.xlane.f32.xlu0 %v1214
  %v1216 = vpop.xlane.xlu0 %1215
  %v1217 = vsel %vm1171, %v1170, 0.0
  %1218 = vadd.xlane.f32.xlu0 %v1217
  %v1219 = vpop.xlane.xlu0 %1218
  %v1220 = vld [vmem:[#allocation2] sm:$0x1]
  %v1222 = vperm.slane %v1220, 0
  %v1224 = vadd.f32 %v1174, %v1222
  %v1225 = vadd.f32 %v1177, %v1222
  %v1226 = vadd.f32 %v1180, %v1222
  %v1227 = vadd.f32 %v1183, %v1222
  %v1228 = vadd.f32 %v1186, %v1222
  %v1229 = vadd.f32 %v1189, %v1222
  %v1230 = vadd.f32 %v1192, %v1222
  %v1231 = vadd.f32 %v1195, %v1222
  %v1232 = vadd.f32 %v1198, %v1222
  %v1233 = vadd.f32 %v1201, %v1222
  %v1234 = vadd.f32 %v1204, %v1222
  %v1235 = vadd.f32 %v1207, %v1222
  %v1236 = vadd.f32 %v1210, %v1222
  %v1237 = vadd.f32 %v1213, %v1222
  %v1238 = vadd.f32 %v1216, %v1222
  %v1239 = vadd.f32 %v1219, %v1222
  %v1240 = vlaneseq
  %v1241 = vshrl.u32 %v1240, 7
  %v1242 = vld [vmem:[%s2] sm:$0xff]
  %v1243 = vld [vmem:[%s2 + $0x8] sm:$0xff]
  %v1244 = vrot.slane %v1242, 1
  %v1245 = vrot.slane %v1242, 2
  %v1246 = vrot.slane %v1242, 3
  %v1247 = vrot.slane %v1242, 4
  %v1248 = vrot.slane %v1242, 5
  %v1249 = vrot.slane %v1242, 6
  %v1250 = vrot.slane %v1242, 7
  %v1251 = vrot.slane %v1243, 1
  %v1252 = vrot.slane %v1243, 2
  %v1253 = vrot.slane %v1243, 3
  %v1254 = vrot.slane %v1243, 4
  %v1255 = vrot.slane %v1243, 5
  %v1256 = vrot.slane %v1243, 6
  %v1257 = vrot.slane %v1243, 7
  %v1258 = vperm.slane %v1242, 0
  %v1259 = vperm.slane %v1244, 0
  %v1260 = vperm.slane %v1245, 0
  %v1261 = vperm.slane %v1246, 0
  %v1262 = vperm.slane %v1247, 0
  %v1263 = vperm.slane %v1248, 0
  %v1264 = vperm.slane %v1249, 0
  %v1265 = vperm.slane %v1250, 0
  %v1266 = vperm.slane %v1243, 0
  %v1267 = vperm.slane %v1251, 0
  %v1268 = vperm.slane %v1252, 0
  %v1269 = vperm.slane %v1253, 0
  %v1270 = vperm.slane %v1254, 0
  %v1271 = vperm.slane %v1255, 0
  %v1272 = vperm.slane %v1256, 0
  %v1273 = vperm.slane %v1257, 0
  %vm1274 = vcmp.lt.s32.totalorder %v1241, %v1258
  %vm1275 = vcmp.lt.s32.totalorder %v1241, %v1259
  %vm1276 = vcmp.lt.s32.totalorder %v1241, %v1260
  %vm1277 = vcmp.lt.s32.totalorder %v1241, %v1261
  %vm1278 = vcmp.lt.s32.totalorder %v1241, %v1262
  %vm1279 = vcmp.lt.s32.totalorder %v1241, %v1263
  %vm1280 = vcmp.lt.s32.totalorder %v1241, %v1264
  %vm1281 = vcmp.lt.s32.totalorder %v1241, %v1265
  %vm1282 = vcmp.lt.s32.totalorder %v1241, %v1266
  %vm1283 = vcmp.lt.s32.totalorder %v1241, %v1267
  %vm1284 = vcmp.lt.s32.totalorder %v1241, %v1268
  %vm1285 = vcmp.lt.s32.totalorder %v1241, %v1269
  %vm1286 = vcmp.lt.s32.totalorder %v1241, %v1270
  %vm1287 = vcmp.lt.s32.totalorder %v1241, %v1271
  %vm1288 = vcmp.lt.s32.totalorder %v1241, %v1272
  %vm1289 = vcmp.lt.s32.totalorder %v1241, %v1273
  %v1290 = vsel %vm1274, %v1224, 0.0
  %v1291 = vsel %vm1275, %v1225, 0.0
  %v1292 = vsel %vm1276, %v1226, 0.0
  %v1293 = vsel %vm1277, %v1227, 0.0
  %v1294 = vsel %vm1278, %v1228, 0.0
  %v1295 = vsel %vm1279, %v1229, 0.0
  %v1296 = vsel %vm1280, %v1230, 0.0
  %v1297 = vsel %vm1281, %v1231, 0.0
  %v1298 = vsel %vm1282, %v1232, 0.0
  %v1299 = vsel %vm1283, %v1233, 0.0
  %v1300 = vsel %vm1284, %v1234, 0.0
  %v1301 = vsel %vm1285, %v1235, 0.0
  %v1302 = vsel %vm1286, %v1236, 0.0
  %v1303 = vsel %vm1287, %v1237, 0.0
  %v1304 = vsel %vm1288, %v1238, 0.0
  %v1305 = vsel %vm1289, %v1239, 0.0
  %1307 = vset.pattern.permute.xlu0 0
  %1308 = vperm.xlu0 %1307, %v1290
  %v1309 = vpop.permute.xlu0 %1308
  %1312 = vset.pattern.permute.xlu0 0
  %1313 = vperm.xlu0 %1312, %v1291
  %v1314 = vpop.permute.xlu0 %1313
  %1317 = vset.pattern.permute.xlu0 0
  %1318 = vperm.xlu0 %1317, %v1292
  %v1319 = vpop.permute.xlu0 %1318
  %1322 = vset.pattern.permute.xlu0 0
  %1323 = vperm.xlu0 %1322, %v1293
  %v1324 = vpop.permute.xlu0 %1323
  %1327 = vset.pattern.permute.xlu0 0
  %1328 = vperm.xlu0 %1327, %v1294
  %v1329 = vpop.permute.xlu0 %1328
  %1332 = vset.pattern.permute.xlu0 0
  %1333 = vperm.xlu0 %1332, %v1295
  %v1334 = vpop.permute.xlu0 %1333
  %1337 = vset.pattern.permute.xlu0 0
  %1338 = vperm.xlu0 %1337, %v1296
  %v1339 = vpop.permute.xlu0 %1338
  %1342 = vset.pattern.permute.xlu0 0
  %1343 = vperm.xlu0 %1342, %v1297
  %v1344 = vpop.permute.xlu0 %1343
  %1347 = vset.pattern.permute.xlu0 0
  %1348 = vperm.xlu0 %1347, %v1298
  %v1349 = vpop.permute.xlu0 %1348
  %1352 = vset.pattern.permute.xlu0 0
  %1353 = vperm.xlu0 %1352, %v1299
  %v1354 = vpop.permute.xlu0 %1353
  %1357 = vset.pattern.permute.xlu0 0
  %1358 = vperm.xlu0 %1357, %v1300
  %v1359 = vpop.permute.xlu0 %1358
  %1362 = vset.pattern.permute.xlu0 0
  %1363 = vperm.xlu0 %1362, %v1301
  %v1364 = vpop.permute.xlu0 %1363
  %1367 = vset.pattern.permute.xlu0 0
  %1368 = vperm.xlu0 %1367, %v1302
  %v1369 = vpop.permute.xlu0 %1368
  %1372 = vset.pattern.permute.xlu0 0
  %1373 = vperm.xlu0 %1372, %v1303
  %v1374 = vpop.permute.xlu0 %1373
  %1377 = vset.pattern.permute.xlu0 0
  %1378 = vperm.xlu0 %1377, %v1304
  %v1379 = vpop.permute.xlu0 %1378
  %1382 = vset.pattern.permute.xlu0 0
  %1383 = vperm.xlu0 %1382, %v1305
  %v1384 = vpop.permute.xlu0 %1383
  %v1386 = vmul.f32 %v1309, %v39
  %v1387 = vmul.f32 %v1314, %v40
  %v1388 = vmul.f32 %v1319, %v41
  %v1389 = vmul.f32 %v1324, %v42
  %v1390 = vmul.f32 %v1329, %v43
  %v1391 = vmul.f32 %v1334, %v44
  %v1392 = vmul.f32 %v1339, %v45
  %v1393 = vmul.f32 %v1344, %v46
  %v1394 = vmul.f32 %v1349, %v47
  %v1395 = vmul.f32 %v1354, %v48
  %v1396 = vmul.f32 %v1359, %v49
  %v1397 = vmul.f32 %v1364, %v50
  %v1398 = vmul.f32 %v1369, %v51
  %v1399 = vmul.f32 %v1374, %v52
  %v1400 = vmul.f32 %v1379, %v53
  %v1401 = vmul.f32 %v1384, %v54
  %v1402 = vsel %vm183, %v1386, 0.0
  %v1403 = vrot.slane %v1402, 4
  %v1404 = vadd.f32 %v1402, %v1403
  %v1405 = vrot.slane %v1404, 2
  %v1406 = vadd.f32 %v1404, %v1405
  %v1407 = vrot.slane %v1406, 1
  %v1408 = vadd.f32 %v1406, %v1407
  %v1409 = vsel %vm183, %v1387, 0.0
  %v1410 = vrot.slane %v1409, 4
  %v1411 = vadd.f32 %v1409, %v1410
  %v1412 = vrot.slane %v1411, 2
  %v1413 = vadd.f32 %v1411, %v1412
  %v1414 = vrot.slane %v1413, 1
  %v1415 = vadd.f32 %v1413, %v1414
  %v1416 = vsel %vm183, %v1388, 0.0
  %v1417 = vrot.slane %v1416, 4
  %v1418 = vadd.f32 %v1416, %v1417
  %v1419 = vrot.slane %v1418, 2
  %v1420 = vadd.f32 %v1418, %v1419
  %v1421 = vrot.slane %v1420, 1
  %v1422 = vadd.f32 %v1420, %v1421
  %v1423 = vsel %vm183, %v1389, 0.0
  %v1424 = vrot.slane %v1423, 4
  %v1425 = vadd.f32 %v1423, %v1424
  %v1426 = vrot.slane %v1425, 2
  %v1427 = vadd.f32 %v1425, %v1426
  %v1428 = vrot.slane %v1427, 1
  %v1429 = vadd.f32 %v1427, %v1428
  %v1430 = vsel %vm183, %v1390, 0.0
  %v1431 = vrot.slane %v1430, 4
  %v1432 = vadd.f32 %v1430, %v1431
  %v1433 = vrot.slane %v1432, 2
  %v1434 = vadd.f32 %v1432, %v1433
  %v1435 = vrot.slane %v1434, 1
  %v1436 = vadd.f32 %v1434, %v1435
  %v1437 = vsel %vm183, %v1391, 0.0
  %v1438 = vrot.slane %v1437, 4
  %v1439 = vadd.f32 %v1437, %v1438
  %v1440 = vrot.slane %v1439, 2
  %v1441 = vadd.f32 %v1439, %v1440
  %v1442 = vrot.slane %v1441, 1
  %v1443 = vadd.f32 %v1441, %v1442
  %v1444 = vsel %vm183, %v1392, 0.0
  %v1445 = vrot.slane %v1444, 4
  %v1446 = vadd.f32 %v1444, %v1445
  %v1447 = vrot.slane %v1446, 2
  %v1448 = vadd.f32 %v1446, %v1447
  %v1449 = vrot.slane %v1448, 1
  %v1450 = vadd.f32 %v1448, %v1449
  %v1451 = vsel %vm183, %v1393, 0.0
  %v1452 = vrot.slane %v1451, 4
  %v1453 = vadd.f32 %v1451, %v1452
  %v1454 = vrot.slane %v1453, 2
  %v1455 = vadd.f32 %v1453, %v1454
  %v1456 = vrot.slane %v1455, 1
  %v1457 = vadd.f32 %v1455, %v1456
  %v1458 = vsel %vm183, %v1394, 0.0
  %v1459 = vrot.slane %v1458, 4
  %v1460 = vadd.f32 %v1458, %v1459
  %v1461 = vrot.slane %v1460, 2
  %v1462 = vadd.f32 %v1460, %v1461
  %v1463 = vrot.slane %v1462, 1
  %v1464 = vadd.f32 %v1462, %v1463
  %v1465 = vsel %vm183, %v1395, 0.0
  %v1466 = vrot.slane %v1465, 4
  %v1467 = vadd.f32 %v1465, %v1466
  %v1468 = vrot.slane %v1467, 2
  %v1469 = vadd.f32 %v1467, %v1468
  %v1470 = vrot.slane %v1469, 1
  %v1471 = vadd.f32 %v1469, %v1470
  %v1472 = vsel %vm183, %v1396, 0.0
  %v1473 = vrot.slane %v1472, 4
  %v1474 = vadd.f32 %v1472, %v1473
  %v1475 = vrot.slane %v1474, 2
  %v1476 = vadd.f32 %v1474, %v1475
  %v1477 = vrot.slane %v1476, 1
  %v1478 = vadd.f32 %v1476, %v1477
  %v1479 = vsel %vm183, %v1397, 0.0
  %v1480 = vrot.slane %v1479, 4
  %v1481 = vadd.f32 %v1479, %v1480
  %v1482 = vrot.slane %v1481, 2
  %v1483 = vadd.f32 %v1481, %v1482
  %v1484 = vrot.slane %v1483, 1
  %v1485 = vadd.f32 %v1483, %v1484
  %v1486 = vsel %vm183, %v1398, 0.0
  %v1487 = vrot.slane %v1486, 4
  %v1488 = vadd.f32 %v1486, %v1487
  %v1489 = vrot.slane %v1488, 2
  %v1490 = vadd.f32 %v1488, %v1489
  %v1491 = vrot.slane %v1490, 1
  %v1492 = vadd.f32 %v1490, %v1491
  %v1493 = vsel %vm183, %v1399, 0.0
  %v1494 = vrot.slane %v1493, 4
  %v1495 = vadd.f32 %v1493, %v1494
  %v1496 = vrot.slane %v1495, 2
  %v1497 = vadd.f32 %v1495, %v1496
  %v1498 = vrot.slane %v1497, 1
  %v1499 = vadd.f32 %v1497, %v1498
  %v1500 = vsel %vm183, %v1400, 0.0
  %v1501 = vrot.slane %v1500, 4
  %v1502 = vadd.f32 %v1500, %v1501
  %v1503 = vrot.slane %v1502, 2
  %v1504 = vadd.f32 %v1502, %v1503
  %v1505 = vrot.slane %v1504, 1
  %v1506 = vadd.f32 %v1504, %v1505
  %v1507 = vsel %vm183, %v1401, 0.0
  %v1508 = vrot.slane %v1507, 4
  %v1509 = vadd.f32 %v1507, %v1508
  %v1510 = vrot.slane %v1509, 2
  %v1511 = vadd.f32 %v1509, %v1510
  %v1512 = vrot.slane %v1511, 1
  %v1513 = vadd.f32 %v1511, %v1512
  %vm1530 = vcmask 1041409
  %v1531 = vsel %vm1530, %v1415, %v1408
  %vm1532 = vcmask 1042434
  %v1533 = vsel %vm1532, %v1422, %v1531
  %vm1534 = vcmask 1043459
  %v1535 = vsel %vm1534, %v1429, %v1533
  %vm1536 = vcmask 1044484
  %v1537 = vsel %vm1536, %v1436, %v1535
  %vm1538 = vcmask 1045509
  %v1539 = vsel %vm1538, %v1443, %v1537
  %vm1540 = vcmask 1046534
  %v1541 = vsel %vm1540, %v1450, %v1539
  %vm1542 = vcmask 1047559
  %v1543 = vsel %vm1542, %v1457, %v1541
  %v1544 = vsel %vm1530, %v1471, %v1464
  %v1545 = vsel %vm1532, %v1478, %v1544
  %v1546 = vsel %vm1534, %v1485, %v1545
  %v1547 = vsel %vm1536, %v1492, %v1546
  %v1548 = vsel %vm1538, %v1499, %v1547
  %v1549 = vsel %vm1540, %v1506, %v1548
  %v1550 = vsel %vm1542, %v1513, %v1549
  %1553 = vst.msk [vmem:[%s10] sm:$0xff] %vm183, %v1543
  %1554 = vst.msk [vmem:[%s10 + $0x8] sm:$0xff] %vm183, %v1550
  // Predicated region
  $region42: #{tpu_custom_call.1} parent=0 // pred_check
    _
  $region43: #{tpu_custom_call.1} parent=0 // pred_check_branch
    %1556 = sbr.rel (0) target = $region45
  $region44: #{tpu_custom_call.1} parent=0 // pred_region
    _
  $region45: #{tpu_custom_call.1} parent=0 // pred_fallthru
    _
  // Predicated region
  $region46: #{tpu_custom_call.1} parent=0 // pred_check
    _
  $region47: #{tpu_custom_call.1} parent=0 // pred_check_branch
    %1558 = sbr.rel (0) target = $region49
  $region48: #{tpu_custom_call.1} parent=0 // pred_region
    _
  $region49: #{tpu_custom_call.1} parent=0 // pred_fallthru
    _

</llo_original>
